<compile_context>
chip_gen: v7x
topology: tpu7x:2x2x1
jax: 0.10.0
libtpu: 0.0.40
codegen_flags: <defaults>
</compile_context>

<pallas_src>
import functools
import math

import jax
import jax.numpy as jnp
from jax.experimental import pallas as pl
from jax.experimental.pallas import tpu as pltpu

# Padded, lane/sublane-friendly layout constants (one full 128-lane block per
# gate, 8 f32 sublanes of batch).
_HP = 128
_CP = 128
_LP = 128


def _rnn_conditioner_kernel(xf_ref, wih_ref, whh_ref, bif_ref, bhn_ref,
                            wp_ref, bp_ref, out_ref, gi_ref,
                            *, bp_batch, seq_len, hp):
    """Single-program kernel: hoisted input projection + unrolled GRU + linear.

    xf_ref  : (T*Bp, Cp)   bf16 VMEM  (time-major, batch padded to Bp, channels padded to Cp)
    wih_ref : (Cp, 3*Hp)   bf16 VMEM  (gate-blocked: each gate owns a 128-lane block)
    whh_ref : (Hp, 3*Hp)   f32  VMEM  (f32 recurrent weights -> no per-step bf16 rounding)
    bif_ref : (1, 3*Hp)    f32  VMEM  (b_ih with b_hr/b_hz folded in; n-block = b_in only)
    bhn_ref : (1, Hp)      f32  VMEM  (b_hn, applied inside the recurrence before r*)
    wp_ref  : (Hp, Lp)     bf16 VMEM
    bp_ref  : (1, Lp)      f32  VMEM
    out_ref : (Bp, Lp)     f32  VMEM
    gi_ref  : (T*Bp, 3*Hp) f32  VMEM scratch (hoisted input projection, written once)
    """
    Bp, T, Hp = bp_batch, seq_len, hp

    # Hoisted input projection for ALL timesteps: one MXU matmul off the
    # recurrence critical path, pinned in VMEM scratch (not held in vregs).
    gi_ref[...] = jnp.dot(xf_ref[...], wih_ref[...],
                          preferred_element_type=jnp.float32) + bif_ref[...]

    w_hh = whh_ref[...]            # f32 (Hp, 3Hp)
    b_hn = bhn_ref[...]            # f32 (1, Hp)

    h = jnp.zeros((Bp, Hp), jnp.float32)

    def _sigmoid(v):               # EUP tanh form; avoids a VALU divide on the chain
        return 0.5 * (jnp.tanh(0.5 * v) + 1.0)

    # T is small and static -> full unroll. Each step: one f32 MXU matmul on
    # the serial chain + f32 VPU/EUP gate math on lane-aligned 128-wide blocks.
    for t in range(T):
        gi = gi_ref[pl.ds(t * Bp, Bp), :]                                 # (Bp, 3Hp) 8-sublane aligned
        gh = jnp.dot(h, w_hh, preferred_element_type=jnp.float32)         # (Bp, 3Hp)

        # PyTorch GRU gate ordering: [reset, update, new]; slices are whole
        # 128-lane blocks -> free vreg views.
        r = _sigmoid(gi[:, 0 * Hp:1 * Hp] + gh[:, 0 * Hp:1 * Hp])
        z = _sigmoid(gi[:, 1 * Hp:2 * Hp] + gh[:, 1 * Hp:2 * Hp])
        n = jnp.tanh(gi[:, 2 * Hp:3 * Hp] + r * (gh[:, 2 * Hp:3 * Hp] + b_hn))
        h = (1.0 - z) * n + z * h

    cond = jnp.dot(h.astype(jnp.bfloat16), wp_ref[...],
                   preferred_element_type=jnp.float32) + bp_ref[...]       # (Bp, Lp)
    out_ref[...] = cond.astype(out_ref.dtype)


def init_params(key, seq_channels, hidden_size, latent_dim):
    """Deterministic parameter init mirroring nn.GRU / nn.Linear shapes."""
    k = 1.0 / math.sqrt(hidden_size)
    keys = jax.random.split(key, 6)
    # nn.GRU: weight_ih_l0 (3H, C), weight_hh_l0 (3H, H), biases (3H,)
    w_ih = jax.random.uniform(keys[0], (3 * hidden_size, seq_channels), jnp.float32, -k, k)
    w_hh = jax.random.uniform(keys[1], (3 * hidden_size, hidden_size), jnp.float32, -k, k)
    b_ih = jax.random.uniform(keys[2], (3 * hidden_size,), jnp.float32, -k, k)
    b_hh = jax.random.uniform(keys[3], (3 * hidden_size,), jnp.float32, -k, k)
    # nn.Linear(hidden_size, latent_dim): weight (L, H), bias (L,)
    w_proj = jax.random.uniform(keys[4], (latent_dim, hidden_size), jnp.float32, -k, k)
    b_proj = jax.random.uniform(keys[5], (latent_dim,), jnp.float32, -k, k)
    return dict(w_ih=w_ih, w_hh=w_hh, b_ih=b_ih, b_hh=b_hh,
                w_proj=w_proj, b_proj=b_proj)


def _gate_blocked_weight(w, H, Hp, in_dim, in_pad, dtype):
    """(3H, in_dim) -> (in_pad, 3*Hp): gate g occupies columns [g*Hp, g*Hp+H), rest zero."""
    out = jnp.zeros((in_pad, 3 * Hp), dtype)
    for g in range(3):
        blk = w[g * H:(g + 1) * H, :].T.astype(dtype)          # (in_dim, H)
        out = out.at[:in_dim, g * Hp:g * Hp + H].set(blk)
    return out


def _gate_blocked_bias(b, H, Hp):
    """(3H,) -> (1, 3*Hp): gate g occupies lanes [g*Hp, g*Hp+H), rest zero."""
    out = jnp.zeros((1, 3 * Hp), jnp.float32)
    for g in range(3):
        out = out.at[0, g * Hp:g * Hp + H].set(b[g * H:(g + 1) * H])
    return out


def pack_params(params, *, seq_channels, hidden_size, latent_dim):
    """One-time packing of weights into the padded, gate-blocked kernel layout.

    Call ONCE per model; pass the result into rnn_conditioner() every step.
    Zero padding keeps the math exact (padded lanes yield h == 0 forever).
    """
    H, C, L = hidden_size, seq_channels, latent_dim
    Hp, Cp, Lp = _HP, _CP, _LP

    b_ih, b_hh = params["b_ih"], params["b_hh"]
    # Fold b_hr / b_hz into the input-side bias (r and z gates see b_i?+b_h? as
    # a plain sum); only b_hn must remain inside the recurrence.
    b_fold = jnp.concatenate([b_ih[0 * H:1 * H] + b_hh[0 * H:1 * H],
                              b_ih[1 * H:2 * H] + b_hh[1 * H:2 * H],
                              b_ih[2 * H:3 * H]])

    packed = dict(
        w_ih=_gate_blocked_weight(params["w_ih"], H, Hp, C, Cp, jnp.bfloat16),   # (Cp, 3Hp)
        w_hh=_gate_blocked_weight(params["w_hh"], H, Hp, H, Hp, jnp.float32),    # (Hp, 3Hp) f32
        b_if=_gate_blocked_bias(b_fold, H, Hp),                                  # (1, 3Hp)
        b_hn=jnp.zeros((1, Hp), jnp.float32).at[0, :H].set(b_hh[2 * H:3 * H]),   # (1, Hp)
        w_p=jnp.zeros((Hp, Lp), jnp.bfloat16).at[:H, :L].set(
            params["w_proj"].T.astype(jnp.bfloat16)),                            # (Hp, Lp)
        b_p=jnp.zeros((1, Lp), jnp.float32).at[0, :L].set(params["b_proj"]),     # (1, Lp)
    )
    return jax.tree_util.tree_map(jax.device_put, packed)


@functools.partial(jax.jit, static_argnames=("hidden_size", "latent_dim"))
def rnn_conditioner(x, packed, *, hidden_size, latent_dim):
    """x: (B, T, C) float32, packed: output of pack_params -> (B, latent_dim) float32."""
    B, T, C = x.shape
    H, L = hidden_size, latent_dim
    Hp, Cp, Lp = _HP, _CP, _LP
    Bp = max(8, ((B + 7) // 8) * 8)   # fill all f32 sublanes

    # x: (B,T,C) -> time-major (T,Bp,Cp) -> flat (T*Bp, Cp), bf16 for the MXU.
    # (Fuses with the pallas_call under jit; weights are pre-packed.)
    x_tm = jnp.transpose(x, (1, 0, 2)).astype(jnp.bfloat16)                      # (T, B, C)
    x_flat = jnp.pad(x_tm, ((0, 0), (0, Bp - B), (0, Cp - C))).reshape(T * Bp, Cp)

    kernel = functools.partial(_rnn_conditioner_kernel,
                               bp_batch=Bp, seq_len=T, hp=Hp)

    args = (x_flat, packed["w_ih"], packed["w_hh"], packed["b_if"],
            packed["b_hn"], packed["w_p"], packed["b_p"])

    # Advisory cost estimate on REAL (unpadded) work; bytes are what is DMA'd.
    bytes_accessed = sum(a.size * a.dtype.itemsize for a in args) + Bp * Lp * 4
    cost = pl.CostEstimate(
        flops=(2 * T * B * C * 3 * H        # hoisted input projection
               + 2 * T * B * H * 3 * H      # recurrent matmuls
               + 2 * B * H * L              # output projection
               + 12 * T * B * H),           # gate elementwise
        transcendentals=3 * T * B * H,
        bytes_accessed=bytes_accessed,
    )

    vmem = pl.BlockSpec(memory_space=pltpu.MemorySpace.VMEM)
    out_p = pl.pallas_call(
        kernel,
        out_shape=jax.ShapeDtypeStruct((Bp, Lp), jnp.float32),
        in_specs=[vmem] * len(args),
        out_specs=vmem,
        scratch_shapes=[pltpu.VMEM((T * Bp, 3 * Hp), jnp.float32)],   # pinned gi_all
        cost_estimate=cost,
    )(*args)

    return out_p[:B, :L]


def _reference(x, params, hidden_size, latent_dim):
    """Pure-JAX f32 reference (PyTorch GRU semantics) for a sanity check."""
    B, T, C = x.shape
    H = hidden_size
    h = jnp.zeros((B, H), jnp.float32)
    for t in range(T):
        gi = x[:, t, :] @ params["w_ih"].T + params["b_ih"]
        gh = h @ params["w_hh"].T + params["b_hh"]
        r = jax.nn.sigmoid(gi[:, :H] + gh[:, :H])
        z = jax.nn.sigmoid(gi[:, H:2 * H] + gh[:, H:2 * H])
        n = jnp.tanh(gi[:, 2 * H:] + r * gh[:, 2 * H:])
        h = (1.0 - z) * n + z * h
    return h @ params["w_proj"].T + params["b_proj"]


if __name__ == "__main__":
    # Small shapes consistent with the module's __init__ signature.
    batch = 2
    seq_channels = 4
    seq_length = 8
    hidden_size = 32
    latent_dim = 16

    key = jax.random.PRNGKey(0)
    kx, kp = jax.random.split(key)
    x = jax.random.normal(kx, (batch, seq_length, seq_channels), jnp.float32)
    params = init_params(kp, seq_channels, hidden_size, latent_dim)

    # One-time weight packing (hoisted out of the per-call hot path).
    packed = pack_params(params, seq_channels=seq_channels,
                         hidden_size=hidden_size, latent_dim=latent_dim)

    out = rnn_conditioner(x, packed, hidden_size=hidden_size, latent_dim=latent_dim)
    out = jax.block_until_ready(out)

    ref = _reference(x, params, hidden_size, latent_dim)
    assert out.shape == (batch, latent_dim), out.shape
    # Only the one-shot input/output projections use bf16 operands (recurrence
    # is f32), so the tolerance is tighter than before.
    err = float(jnp.max(jnp.abs(out - ref)))
    assert jnp.allclose(out, ref, atol=2e-2, rtol=2e-2), err

    print("KERNEL_OK")
</pallas_src>

<mosaic_0001>
module attributes {stable_mosaic.version = 11 : i64} {
  func.func @_rnn_conditioner_kernel(%arg0: memref<64x128xbf16, #tpu.memory_space<vmem>>, %arg1: memref<128x384xbf16, #tpu.memory_space<vmem>>, %arg2: memref<128x384xf32, #tpu.memory_space<vmem>>, %arg3: memref<1x384xf32, #tpu.memory_space<vmem>>, %arg4: memref<1x128xf32, #tpu.memory_space<vmem>>, %arg5: memref<128x128xbf16, #tpu.memory_space<vmem>>, %arg6: memref<1x128xf32, #tpu.memory_space<vmem>>, %arg7: memref<8x128xf32, #tpu.memory_space<vmem>>, %arg8: memref<64x384xf32, #tpu.memory_space<vmem>>) attributes {dimension_semantics = [], scalar_prefetch = 0 : i64, scratch_operands = 1 : i64, tpu.core_type = #tpu.core_type<tc>} {
    %c0 = arith.constant 0 : index
    %c0_0 = arith.constant 0 : index
    %0 = vector.load %arg0[%c0, %c0_0] : memref<64x128xbf16, #tpu.memory_space<vmem>>, vector<64x128xbf16>
    %c0_1 = arith.constant 0 : index
    %c0_2 = arith.constant 0 : index
    %1 = vector.load %arg1[%c0_1, %c0_2] : memref<128x384xbf16, #tpu.memory_space<vmem>>, vector<128x384xbf16>
    %cst = arith.constant dense<0.000000e+00> : vector<64x384xf32>
    %2 = tpu.matmul %0, %1, %cst {dimension_numbers = #tpu.dot_dimension_numbers<[1], [0], [0], [1], [0, 0, 1, 1], [], []>} : vector<64x128xbf16>, vector<128x384xbf16>, vector<64x384xf32> -> vector<64x384xf32>
    %c0_3 = arith.constant 0 : index
    %c0_4 = arith.constant 0 : index
    %3 = vector.load %arg3[%c0_3, %c0_4] : memref<1x384xf32, #tpu.memory_space<vmem>>, vector<1x384xf32>
    %4 = vector.broadcast %3 : vector<1x384xf32> to vector<64x384xf32>
    %5 = arith.addf %2, %4 : vector<64x384xf32>
    %c0_5 = arith.constant 0 : index
    %c0_6 = arith.constant 0 : index
    %6 = vector.load %arg8[%c0_5, %c0_6] : memref<64x384xf32, #tpu.memory_space<vmem>>, vector<64x384xf32>
    tpu.vector_store %arg8[%c0_5, %c0_6], %5 {strides = array<i32>} : memref<64x384xf32, #tpu.memory_space<vmem>>, vector<64x384xf32>,
    %c0_7 = arith.constant 0 : index
    %c0_8 = arith.constant 0 : index
    %7 = vector.load %arg2[%c0_7, %c0_8] : memref<128x384xf32, #tpu.memory_space<vmem>>, vector<128x384xf32>
    %c0_9 = arith.constant 0 : index
    %c0_10 = arith.constant 0 : index
    %8 = vector.load %arg4[%c0_9, %c0_10] : memref<1x128xf32, #tpu.memory_space<vmem>>, vector<1x128xf32>
    %cst_11 = arith.constant 0.000000e+00 : f32
    %9 = vector.broadcast %cst_11 : f32 to vector<8x128xf32>
    %c0_12 = arith.constant 0 : index
    %c0_13 = arith.constant 0 : index
    %10 = vector.load %arg8[%c0_12, %c0_13] : memref<64x384xf32, #tpu.memory_space<vmem>>, vector<8x384xf32>
    %cst_14 = arith.constant dense<0.000000e+00> : vector<8x384xf32>
    %11 = tpu.matmul %9, %7, %cst_14 {dimension_numbers = #tpu.dot_dimension_numbers<[1], [0], [0], [1], [0, 0, 1, 1], [], []>} : vector<8x128xf32>, vector<128x384xf32>, vector<8x384xf32> -> vector<8x384xf32>
    %12 = vector.extract_strided_slice %10 {offsets = [0, 0], sizes = [8, 128], strides = [1, 1]} : vector<8x384xf32> to vector<8x128xf32>
    %13 = vector.extract_strided_slice %11 {offsets = [0, 0], sizes = [8, 128], strides = [1, 1]} : vector<8x384xf32> to vector<8x128xf32>
    %14 = arith.addf %12, %13 : vector<8x128xf32>
    %cst_15 = arith.constant 5.000000e-01 : f32
    %15 = vector.broadcast %cst_15 : f32 to vector<8x128xf32>
    %16 = arith.mulf %15, %14 : vector<8x128xf32>
    %17 = math.tanh %16 : vector<8x128xf32>
    %cst_16 = arith.constant 1.000000e+00 : f32
    %18 = vector.broadcast %cst_16 : f32 to vector<8x128xf32>
    %19 = arith.addf %17, %18 : vector<8x128xf32>
    %cst_17 = arith.constant 5.000000e-01 : f32
    %20 = vector.broadcast %cst_17 : f32 to vector<8x128xf32>
    %21 = arith.mulf %20, %19 : vector<8x128xf32>
    %22 = vector.extract_strided_slice %10 {offsets = [0, 128], sizes = [8, 128], strides = [1, 1]} : vector<8x384xf32> to vector<8x128xf32>
    %23 = vector.extract_strided_slice %11 {offsets = [0, 128], sizes = [8, 128], strides = [1, 1]} : vector<8x384xf32> to vector<8x128xf32>
    %24 = arith.addf %22, %23 : vector<8x128xf32>
    %cst_18 = arith.constant 5.000000e-01 : f32
    %25 = vector.broadcast %cst_18 : f32 to vector<8x128xf32>
    %26 = arith.mulf %25, %24 : vector<8x128xf32>
    %27 = math.tanh %26 : vector<8x128xf32>
    %cst_19 = arith.constant 1.000000e+00 : f32
    %28 = vector.broadcast %cst_19 : f32 to vector<8x128xf32>
    %29 = arith.addf %27, %28 : vector<8x128xf32>
    %cst_20 = arith.constant 5.000000e-01 : f32
    %30 = vector.broadcast %cst_20 : f32 to vector<8x128xf32>
    %31 = arith.mulf %30, %29 : vector<8x128xf32>
    %32 = vector.extract_strided_slice %10 {offsets = [0, 256], sizes = [8, 128], strides = [1, 1]} : vector<8x384xf32> to vector<8x128xf32>
    %33 = vector.extract_strided_slice %11 {offsets = [0, 256], sizes = [8, 128], strides = [1, 1]} : vector<8x384xf32> to vector<8x128xf32>
    %34 = vector.broadcast %8 : vector<1x128xf32> to vector<8x128xf32>
    %35 = arith.addf %33, %34 : vector<8x128xf32>
    %36 = arith.mulf %21, %35 : vector<8x128xf32>
    %37 = arith.addf %32, %36 : vector<8x128xf32>
    %38 = math.tanh %37 : vector<8x128xf32>
    %cst_21 = arith.constant 1.000000e+00 : f32
    %39 = vector.broadcast %cst_21 : f32 to vector<8x128xf32>
    %40 = arith.subf %39, %31 : vector<8x128xf32>
    %41 = arith.mulf %40, %38 : vector<8x128xf32>
    %42 = arith.mulf %31, %9 : vector<8x128xf32>
    %43 = arith.addf %41, %42 : vector<8x128xf32>
    %c8 = arith.constant 8 : index
    %c0_22 = arith.constant 0 : index
    %44 = vector.load %arg8[%c8, %c0_22] : memref<64x384xf32, #tpu.memory_space<vmem>>, vector<8x384xf32>
    %cst_23 = arith.constant dense<0.000000e+00> : vector<8x384xf32>
    %45 = tpu.matmul %43, %7, %cst_23 {dimension_numbers = #tpu.dot_dimension_numbers<[1], [0], [0], [1], [0, 0, 1, 1], [], []>} : vector<8x128xf32>, vector<128x384xf32>, vector<8x384xf32> -> vector<8x384xf32>
    %46 = vector.extract_strided_slice %44 {offsets = [0, 0], sizes = [8, 128], strides = [1, 1]} : vector<8x384xf32> to vector<8x128xf32>
    %47 = vector.extract_strided_slice %45 {offsets = [0, 0], sizes = [8, 128], strides = [1, 1]} : vector<8x384xf32> to vector<8x128xf32>
    %48 = arith.addf %46, %47 : vector<8x128xf32>
    %cst_24 = arith.constant 5.000000e-01 : f32
    %49 = vector.broadcast %cst_24 : f32 to vector<8x128xf32>
    %50 = arith.mulf %49, %48 : vector<8x128xf32>
    %51 = math.tanh %50 : vector<8x128xf32>
    %cst_25 = arith.constant 1.000000e+00 : f32
    %52 = vector.broadcast %cst_25 : f32 to vector<8x128xf32>
    %53 = arith.addf %51, %52 : vector<8x128xf32>
    %cst_26 = arith.constant 5.000000e-01 : f32
    %54 = vector.broadcast %cst_26 : f32 to vector<8x128xf32>
    %55 = arith.mulf %54, %53 : vector<8x128xf32>
    %56 = vector.extract_strided_slice %44 {offsets = [0, 128], sizes = [8, 128], strides = [1, 1]} : vector<8x384xf32> to vector<8x128xf32>
    %57 = vector.extract_strided_slice %45 {offsets = [0, 128], sizes = [8, 128], strides = [1, 1]} : vector<8x384xf32> to vector<8x128xf32>
    %58 = arith.addf %56, %57 : vector<8x128xf32>
    %cst_27 = arith.constant 5.000000e-01 : f32
    %59 = vector.broadcast %cst_27 : f32 to vector<8x128xf32>
    %60 = arith.mulf %59, %58 : vector<8x128xf32>
    %61 = math.tanh %60 : vector<8x128xf32>
    %cst_28 = arith.constant 1.000000e+00 : f32
    %62 = vector.broadcast %cst_28 : f32 to vector<8x128xf32>
    %63 = arith.addf %61, %62 : vector<8x128xf32>
    %cst_29 = arith.constant 5.000000e-01 : f32
    %64 = vector.broadcast %cst_29 : f32 to vector<8x128xf32>
    %65 = arith.mulf %64, %63 : vector<8x128xf32>
    %66 = vector.extract_strided_slice %44 {offsets = [0, 256], sizes = [8, 128], strides = [1, 1]} : vector<8x384xf32> to vector<8x128xf32>
    %67 = vector.extract_strided_slice %45 {offsets = [0, 256], sizes = [8, 128], strides = [1, 1]} : vector<8x384xf32> to vector<8x128xf32>
    %68 = vector.broadcast %8 : vector<1x128xf32> to vector<8x128xf32>
    %69 = arith.addf %67, %68 : vector<8x128xf32>
    %70 = arith.mulf %55, %69 : vector<8x128xf32>
    %71 = arith.addf %66, %70 : vector<8x128xf32>
    %72 = math.tanh %71 : vector<8x128xf32>
    %cst_30 = arith.constant 1.000000e+00 : f32
    %73 = vector.broadcast %cst_30 : f32 to vector<8x128xf32>
    %74 = arith.subf %73, %65 : vector<8x128xf32>
    %75 = arith.mulf %74, %72 : vector<8x128xf32>
    %76 = arith.mulf %65, %43 : vector<8x128xf32>
    %77 = arith.addf %75, %76 : vector<8x128xf32>
    %c16 = arith.constant 16 : index
    %c0_31 = arith.constant 0 : index
    %78 = vector.load %arg8[%c16, %c0_31] : memref<64x384xf32, #tpu.memory_space<vmem>>, vector<8x384xf32>
    %cst_32 = arith.constant dense<0.000000e+00> : vector<8x384xf32>
    %79 = tpu.matmul %77, %7, %cst_32 {dimension_numbers = #tpu.dot_dimension_numbers<[1], [0], [0], [1], [0, 0, 1, 1], [], []>} : vector<8x128xf32>, vector<128x384xf32>, vector<8x384xf32> -> vector<8x384xf32>
    %80 = vector.extract_strided_slice %78 {offsets = [0, 0], sizes = [8, 128], strides = [1, 1]} : vector<8x384xf32> to vector<8x128xf32>
    %81 = vector.extract_strided_slice %79 {offsets = [0, 0], sizes = [8, 128], strides = [1, 1]} : vector<8x384xf32> to vector<8x128xf32>
    %82 = arith.addf %80, %81 : vector<8x128xf32>
    %cst_33 = arith.constant 5.000000e-01 : f32
    %83 = vector.broadcast %cst_33 : f32 to vector<8x128xf32>
    %84 = arith.mulf %83, %82 : vector<8x128xf32>
    %85 = math.tanh %84 : vector<8x128xf32>
    %cst_34 = arith.constant 1.000000e+00 : f32
    %86 = vector.broadcast %cst_34 : f32 to vector<8x128xf32>
    %87 = arith.addf %85, %86 : vector<8x128xf32>
    %cst_35 = arith.constant 5.000000e-01 : f32
    %88 = vector.broadcast %cst_35 : f32 to vector<8x128xf32>
    %89 = arith.mulf %88, %87 : vector<8x128xf32>
    %90 = vector.extract_strided_slice %78 {offsets = [0, 128], sizes = [8, 128], strides = [1, 1]} : vector<8x384xf32> to vector<8x128xf32>
    %91 = vector.extract_strided_slice %79 {offsets = [0, 128], sizes = [8, 128], strides = [1, 1]} : vector<8x384xf32> to vector<8x128xf32>
    %92 = arith.addf %90, %91 : vector<8x128xf32>
    %cst_36 = arith.constant 5.000000e-01 : f32
    %93 = vector.broadcast %cst_36 : f32 to vector<8x128xf32>
    %94 = arith.mulf %93, %92 : vector<8x128xf32>
    %95 = math.tanh %94 : vector<8x128xf32>
    %cst_37 = arith.constant 1.000000e+00 : f32
    %96 = vector.broadcast %cst_37 : f32 to vector<8x128xf32>
    %97 = arith.addf %95, %96 : vector<8x128xf32>
    %cst_38 = arith.constant 5.000000e-01 : f32
    %98 = vector.broadcast %cst_38 : f32 to vector<8x128xf32>
    %99 = arith.mulf %98, %97 : vector<8x128xf32>
    %100 = vector.extract_strided_slice %78 {offsets = [0, 256], sizes = [8, 128], strides = [1, 1]} : vector<8x384xf32> to vector<8x128xf32>
    %101 = vector.extract_strided_slice %79 {offsets = [0, 256], sizes = [8, 128], strides = [1, 1]} : vector<8x384xf32> to vector<8x128xf32>
    %102 = vector.broadcast %8 : vector<1x128xf32> to vector<8x128xf32>
    %103 = arith.addf %101, %102 : vector<8x128xf32>
    %104 = arith.mulf %89, %103 : vector<8x128xf32>
    %105 = arith.addf %100, %104 : vector<8x128xf32>
    %106 = math.tanh %105 : vector<8x128xf32>
    %cst_39 = arith.constant 1.000000e+00 : f32
    %107 = vector.broadcast %cst_39 : f32 to vector<8x128xf32>
    %108 = arith.subf %107, %99 : vector<8x128xf32>
    %109 = arith.mulf %108, %106 : vector<8x128xf32>
    %110 = arith.mulf %99, %77 : vector<8x128xf32>
    %111 = arith.addf %109, %110 : vector<8x128xf32>
    %c24 = arith.constant 24 : index
    %c0_40 = arith.constant 0 : index
    %112 = vector.load %arg8[%c24, %c0_40] : memref<64x384xf32, #tpu.memory_space<vmem>>, vector<8x384xf32>
    %cst_41 = arith.constant dense<0.000000e+00> : vector<8x384xf32>
    %113 = tpu.matmul %111, %7, %cst_41 {dimension_numbers = #tpu.dot_dimension_numbers<[1], [0], [0], [1], [0, 0, 1, 1], [], []>} : vector<8x128xf32>, vector<128x384xf32>, vector<8x384xf32> -> vector<8x384xf32>
    %114 = vector.extract_strided_slice %112 {offsets = [0, 0], sizes = [8, 128], strides = [1, 1]} : vector<8x384xf32> to vector<8x128xf32>
    %115 = vector.extract_strided_slice %113 {offsets = [0, 0], sizes = [8, 128], strides = [1, 1]} : vector<8x384xf32> to vector<8x128xf32>
    %116 = arith.addf %114, %115 : vector<8x128xf32>
    %cst_42 = arith.constant 5.000000e-01 : f32
    %117 = vector.broadcast %cst_42 : f32 to vector<8x128xf32>
    %118 = arith.mulf %117, %116 : vector<8x128xf32>
    %119 = math.tanh %118 : vector<8x128xf32>
    %cst_43 = arith.constant 1.000000e+00 : f32
    %120 = vector.broadcast %cst_43 : f32 to vector<8x128xf32>
    %121 = arith.addf %119, %120 : vector<8x128xf32>
    %cst_44 = arith.constant 5.000000e-01 : f32
    %122 = vector.broadcast %cst_44 : f32 to vector<8x128xf32>
    %123 = arith.mulf %122, %121 : vector<8x128xf32>
    %124 = vector.extract_strided_slice %112 {offsets = [0, 128], sizes = [8, 128], strides = [1, 1]} : vector<8x384xf32> to vector<8x128xf32>
    %125 = vector.extract_strided_slice %113 {offsets = [0, 128], sizes = [8, 128], strides = [1, 1]} : vector<8x384xf32> to vector<8x128xf32>
    %126 = arith.addf %124, %125 : vector<8x128xf32>
    %cst_45 = arith.constant 5.000000e-01 : f32
    %127 = vector.broadcast %cst_45 : f32 to vector<8x128xf32>
    %128 = arith.mulf %127, %126 : vector<8x128xf32>
    %129 = math.tanh %128 : vector<8x128xf32>
    %cst_46 = arith.constant 1.000000e+00 : f32
    %130 = vector.broadcast %cst_46 : f32 to vector<8x128xf32>
    %131 = arith.addf %129, %130 : vector<8x128xf32>
    %cst_47 = arith.constant 5.000000e-01 : f32
    %132 = vector.broadcast %cst_47 : f32 to vector<8x128xf32>
    %133 = arith.mulf %132, %131 : vector<8x128xf32>
    %134 = vector.extract_strided_slice %112 {offsets = [0, 256], sizes = [8, 128], strides = [1, 1]} : vector<8x384xf32> to vector<8x128xf32>
    %135 = vector.extract_strided_slice %113 {offsets = [0, 256], sizes = [8, 128], strides = [1, 1]} : vector<8x384xf32> to vector<8x128xf32>
    %136 = vector.broadcast %8 : vector<1x128xf32> to vector<8x128xf32>
    %137 = arith.addf %135, %136 : vector<8x128xf32>
    %138 = arith.mulf %123, %137 : vector<8x128xf32>
    %139 = arith.addf %134, %138 : vector<8x128xf32>
    %140 = math.tanh %139 : vector<8x128xf32>
    %cst_48 = arith.constant 1.000000e+00 : f32
    %141 = vector.broadcast %cst_48 : f32 to vector<8x128xf32>
    %142 = arith.subf %141, %133 : vector<8x128xf32>
    %143 = arith.mulf %142, %140 : vector<8x128xf32>
    %144 = arith.mulf %133, %111 : vector<8x128xf32>
    %145 = arith.addf %143, %144 : vector<8x128xf32>
    %c32 = arith.constant 32 : index
    %c0_49 = arith.constant 0 : index
    %146 = vector.load %arg8[%c32, %c0_49] : memref<64x384xf32, #tpu.memory_space<vmem>>, vector<8x384xf32>
    %cst_50 = arith.constant dense<0.000000e+00> : vector<8x384xf32>
    %147 = tpu.matmul %145, %7, %cst_50 {dimension_numbers = #tpu.dot_dimension_numbers<[1], [0], [0], [1], [0, 0, 1, 1], [], []>} : vector<8x128xf32>, vector<128x384xf32>, vector<8x384xf32> -> vector<8x384xf32>
    %148 = vector.extract_strided_slice %146 {offsets = [0, 0], sizes = [8, 128], strides = [1, 1]} : vector<8x384xf32> to vector<8x128xf32>
    %149 = vector.extract_strided_slice %147 {offsets = [0, 0], sizes = [8, 128], strides = [1, 1]} : vector<8x384xf32> to vector<8x128xf32>
    %150 = arith.addf %148, %149 : vector<8x128xf32>
    %cst_51 = arith.constant 5.000000e-01 : f32
    %151 = vector.broadcast %cst_51 : f32 to vector<8x128xf32>
    %152 = arith.mulf %151, %150 : vector<8x128xf32>
    %153 = math.tanh %152 : vector<8x128xf32>
    %cst_52 = arith.constant 1.000000e+00 : f32
    %154 = vector.broadcast %cst_52 : f32 to vector<8x128xf32>
    %155 = arith.addf %153, %154 : vector<8x128xf32>
    %cst_53 = arith.constant 5.000000e-01 : f32
    %156 = vector.broadcast %cst_53 : f32 to vector<8x128xf32>
    %157 = arith.mulf %156, %155 : vector<8x128xf32>
    %158 = vector.extract_strided_slice %146 {offsets = [0, 128], sizes = [8, 128], strides = [1, 1]} : vector<8x384xf32> to vector<8x128xf32>
    %159 = vector.extract_strided_slice %147 {offsets = [0, 128], sizes = [8, 128], strides = [1, 1]} : vector<8x384xf32> to vector<8x128xf32>
    %160 = arith.addf %158, %159 : vector<8x128xf32>
    %cst_54 = arith.constant 5.000000e-01 : f32
    %161 = vector.broadcast %cst_54 : f32 to vector<8x128xf32>
    %162 = arith.mulf %161, %160 : vector<8x128xf32>
    %163 = math.tanh %162 : vector<8x128xf32>
    %cst_55 = arith.constant 1.000000e+00 : f32
    %164 = vector.broadcast %cst_55 : f32 to vector<8x128xf32>
    %165 = arith.addf %163, %164 : vector<8x128xf32>
    %cst_56 = arith.constant 5.000000e-01 : f32
    %166 = vector.broadcast %cst_56 : f32 to vector<8x128xf32>
    %167 = arith.mulf %166, %165 : vector<8x128xf32>
    %168 = vector.extract_strided_slice %146 {offsets = [0, 256], sizes = [8, 128], strides = [1, 1]} : vector<8x384xf32> to vector<8x128xf32>
    %169 = vector.extract_strided_slice %147 {offsets = [0, 256], sizes = [8, 128], strides = [1, 1]} : vector<8x384xf32> to vector<8x128xf32>
    %170 = vector.broadcast %8 : vector<1x128xf32> to vector<8x128xf32>
    %171 = arith.addf %169, %170 : vector<8x128xf32>
    %172 = arith.mulf %157, %171 : vector<8x128xf32>
    %173 = arith.addf %168, %172 : vector<8x128xf32>
    %174 = math.tanh %173 : vector<8x128xf32>
    %cst_57 = arith.constant 1.000000e+00 : f32
    %175 = vector.broadcast %cst_57 : f32 to vector<8x128xf32>
    %176 = arith.subf %175, %167 : vector<8x128xf32>
    %177 = arith.mulf %176, %174 : vector<8x128xf32>
    %178 = arith.mulf %167, %145 : vector<8x128xf32>
    %179 = arith.addf %177, %178 : vector<8x128xf32>
    %c40 = arith.constant 40 : index
    %c0_58 = arith.constant 0 : index
    %180 = vector.load %arg8[%c40, %c0_58] : memref<64x384xf32, #tpu.memory_space<vmem>>, vector<8x384xf32>
    %cst_59 = arith.constant dense<0.000000e+00> : vector<8x384xf32>
    %181 = tpu.matmul %179, %7, %cst_59 {dimension_numbers = #tpu.dot_dimension_numbers<[1], [0], [0], [1], [0, 0, 1, 1], [], []>} : vector<8x128xf32>, vector<128x384xf32>, vector<8x384xf32> -> vector<8x384xf32>
    %182 = vector.extract_strided_slice %180 {offsets = [0, 0], sizes = [8, 128], strides = [1, 1]} : vector<8x384xf32> to vector<8x128xf32>
    %183 = vector.extract_strided_slice %181 {offsets = [0, 0], sizes = [8, 128], strides = [1, 1]} : vector<8x384xf32> to vector<8x128xf32>
    %184 = arith.addf %182, %183 : vector<8x128xf32>
    %cst_60 = arith.constant 5.000000e-01 : f32
    %185 = vector.broadcast %cst_60 : f32 to vector<8x128xf32>
    %186 = arith.mulf %185, %184 : vector<8x128xf32>
    %187 = math.tanh %186 : vector<8x128xf32>
    %cst_61 = arith.constant 1.000000e+00 : f32
    %188 = vector.broadcast %cst_61 : f32 to vector<8x128xf32>
    %189 = arith.addf %187, %188 : vector<8x128xf32>
    %cst_62 = arith.constant 5.000000e-01 : f32
    %190 = vector.broadcast %cst_62 : f32 to vector<8x128xf32>
    %191 = arith.mulf %190, %189 : vector<8x128xf32>
    %192 = vector.extract_strided_slice %180 {offsets = [0, 128], sizes = [8, 128], strides = [1, 1]} : vector<8x384xf32> to vector<8x128xf32>
    %193 = vector.extract_strided_slice %181 {offsets = [0, 128], sizes = [8, 128], strides = [1, 1]} : vector<8x384xf32> to vector<8x128xf32>
    %194 = arith.addf %192, %193 : vector<8x128xf32>
    %cst_63 = arith.constant 5.000000e-01 : f32
    %195 = vector.broadcast %cst_63 : f32 to vector<8x128xf32>
    %196 = arith.mulf %195, %194 : vector<8x128xf32>
    %197 = math.tanh %196 : vector<8x128xf32>
    %cst_64 = arith.constant 1.000000e+00 : f32
    %198 = vector.broadcast %cst_64 : f32 to vector<8x128xf32>
    %199 = arith.addf %197, %198 : vector<8x128xf32>
    %cst_65 = arith.constant 5.000000e-01 : f32
    %200 = vector.broadcast %cst_65 : f32 to vector<8x128xf32>
    %201 = arith.mulf %200, %199 : vector<8x128xf32>
    %202 = vector.extract_strided_slice %180 {offsets = [0, 256], sizes = [8, 128], strides = [1, 1]} : vector<8x384xf32> to vector<8x128xf32>
    %203 = vector.extract_strided_slice %181 {offsets = [0, 256], sizes = [8, 128], strides = [1, 1]} : vector<8x384xf32> to vector<8x128xf32>
    %204 = vector.broadcast %8 : vector<1x128xf32> to vector<8x128xf32>
    %205 = arith.addf %203, %204 : vector<8x128xf32>
    %206 = arith.mulf %191, %205 : vector<8x128xf32>
    %207 = arith.addf %202, %206 : vector<8x128xf32>
    %208 = math.tanh %207 : vector<8x128xf32>
    %cst_66 = arith.constant 1.000000e+00 : f32
    %209 = vector.broadcast %cst_66 : f32 to vector<8x128xf32>
    %210 = arith.subf %209, %201 : vector<8x128xf32>
    %211 = arith.mulf %210, %208 : vector<8x128xf32>
    %212 = arith.mulf %201, %179 : vector<8x128xf32>
    %213 = arith.addf %211, %212 : vector<8x128xf32>
    %c48 = arith.constant 48 : index
    %c0_67 = arith.constant 0 : index
    %214 = vector.load %arg8[%c48, %c0_67] : memref<64x384xf32, #tpu.memory_space<vmem>>, vector<8x384xf32>
    %cst_68 = arith.constant dense<0.000000e+00> : vector<8x384xf32>
    %215 = tpu.matmul %213, %7, %cst_68 {dimension_numbers = #tpu.dot_dimension_numbers<[1], [0], [0], [1], [0, 0, 1, 1], [], []>} : vector<8x128xf32>, vector<128x384xf32>, vector<8x384xf32> -> vector<8x384xf32>
    %216 = vector.extract_strided_slice %214 {offsets = [0, 0], sizes = [8, 128], strides = [1, 1]} : vector<8x384xf32> to vector<8x128xf32>
    %217 = vector.extract_strided_slice %215 {offsets = [0, 0], sizes = [8, 128], strides = [1, 1]} : vector<8x384xf32> to vector<8x128xf32>
    %218 = arith.addf %216, %217 : vector<8x128xf32>
    %cst_69 = arith.constant 5.000000e-01 : f32
    %219 = vector.broadcast %cst_69 : f32 to vector<8x128xf32>
    %220 = arith.mulf %219, %218 : vector<8x128xf32>
    %221 = math.tanh %220 : vector<8x128xf32>
    %cst_70 = arith.constant 1.000000e+00 : f32
    %222 = vector.broadcast %cst_70 : f32 to vector<8x128xf32>
    %223 = arith.addf %221, %222 : vector<8x128xf32>
    %cst_71 = arith.constant 5.000000e-01 : f32
    %224 = vector.broadcast %cst_71 : f32 to vector<8x128xf32>
    %225 = arith.mulf %224, %223 : vector<8x128xf32>
    %226 = vector.extract_strided_slice %214 {offsets = [0, 128], sizes = [8, 128], strides = [1, 1]} : vector<8x384xf32> to vector<8x128xf32>
    %227 = vector.extract_strided_slice %215 {offsets = [0, 128], sizes = [8, 128], strides = [1, 1]} : vector<8x384xf32> to vector<8x128xf32>
    %228 = arith.addf %226, %227 : vector<8x128xf32>
    %cst_72 = arith.constant 5.000000e-01 : f32
    %229 = vector.broadcast %cst_72 : f32 to vector<8x128xf32>
    %230 = arith.mulf %229, %228 : vector<8x128xf32>
    %231 = math.tanh %230 : vector<8x128xf32>
    %cst_73 = arith.constant 1.000000e+00 : f32
    %232 = vector.broadcast %cst_73 : f32 to vector<8x128xf32>
    %233 = arith.addf %231, %232 : vector<8x128xf32>
    %cst_74 = arith.constant 5.000000e-01 : f32
    %234 = vector.broadcast %cst_74 : f32 to vector<8x128xf32>
    %235 = arith.mulf %234, %233 : vector<8x128xf32>
    %236 = vector.extract_strided_slice %214 {offsets = [0, 256], sizes = [8, 128], strides = [1, 1]} : vector<8x384xf32> to vector<8x128xf32>
    %237 = vector.extract_strided_slice %215 {offsets = [0, 256], sizes = [8, 128], strides = [1, 1]} : vector<8x384xf32> to vector<8x128xf32>
    %238 = vector.broadcast %8 : vector<1x128xf32> to vector<8x128xf32>
    %239 = arith.addf %237, %238 : vector<8x128xf32>
    %240 = arith.mulf %225, %239 : vector<8x128xf32>
    %241 = arith.addf %236, %240 : vector<8x128xf32>
    %242 = math.tanh %241 : vector<8x128xf32>
    %cst_75 = arith.constant 1.000000e+00 : f32
    %243 = vector.broadcast %cst_75 : f32 to vector<8x128xf32>
    %244 = arith.subf %243, %235 : vector<8x128xf32>
    %245 = arith.mulf %244, %242 : vector<8x128xf32>
    %246 = arith.mulf %235, %213 : vector<8x128xf32>
    %247 = arith.addf %245, %246 : vector<8x128xf32>
    %c56 = arith.constant 56 : index
    %c0_76 = arith.constant 0 : index
    %248 = vector.load %arg8[%c56, %c0_76] : memref<64x384xf32, #tpu.memory_space<vmem>>, vector<8x384xf32>
    %cst_77 = arith.constant dense<0.000000e+00> : vector<8x384xf32>
    %249 = tpu.matmul %247, %7, %cst_77 {dimension_numbers = #tpu.dot_dimension_numbers<[1], [0], [0], [1], [0, 0, 1, 1], [], []>} : vector<8x128xf32>, vector<128x384xf32>, vector<8x384xf32> -> vector<8x384xf32>
    %250 = vector.extract_strided_slice %248 {offsets = [0, 0], sizes = [8, 128], strides = [1, 1]} : vector<8x384xf32> to vector<8x128xf32>
    %251 = vector.extract_strided_slice %249 {offsets = [0, 0], sizes = [8, 128], strides = [1, 1]} : vector<8x384xf32> to vector<8x128xf32>
    %252 = arith.addf %250, %251 : vector<8x128xf32>
    %cst_78 = arith.constant 5.000000e-01 : f32
    %253 = vector.broadcast %cst_78 : f32 to vector<8x128xf32>
    %254 = arith.mulf %253, %252 : vector<8x128xf32>
    %255 = math.tanh %254 : vector<8x128xf32>
    %cst_79 = arith.constant 1.000000e+00 : f32
    %256 = vector.broadcast %cst_79 : f32 to vector<8x128xf32>
    %257 = arith.addf %255, %256 : vector<8x128xf32>
    %cst_80 = arith.constant 5.000000e-01 : f32
    %258 = vector.broadcast %cst_80 : f32 to vector<8x128xf32>
    %259 = arith.mulf %258, %257 : vector<8x128xf32>
    %260 = vector.extract_strided_slice %248 {offsets = [0, 128], sizes = [8, 128], strides = [1, 1]} : vector<8x384xf32> to vector<8x128xf32>
    %261 = vector.extract_strided_slice %249 {offsets = [0, 128], sizes = [8, 128], strides = [1, 1]} : vector<8x384xf32> to vector<8x128xf32>
    %262 = arith.addf %260, %261 : vector<8x128xf32>
    %cst_81 = arith.constant 5.000000e-01 : f32
    %263 = vector.broadcast %cst_81 : f32 to vector<8x128xf32>
    %264 = arith.mulf %263, %262 : vector<8x128xf32>
    %265 = math.tanh %264 : vector<8x128xf32>
    %cst_82 = arith.constant 1.000000e+00 : f32
    %266 = vector.broadcast %cst_82 : f32 to vector<8x128xf32>
    %267 = arith.addf %265, %266 : vector<8x128xf32>
    %cst_83 = arith.constant 5.000000e-01 : f32
    %268 = vector.broadcast %cst_83 : f32 to vector<8x128xf32>
    %269 = arith.mulf %268, %267 : vector<8x128xf32>
    %270 = vector.extract_strided_slice %248 {offsets = [0, 256], sizes = [8, 128], strides = [1, 1]} : vector<8x384xf32> to vector<8x128xf32>
    %271 = vector.extract_strided_slice %249 {offsets = [0, 256], sizes = [8, 128], strides = [1, 1]} : vector<8x384xf32> to vector<8x128xf32>
    %272 = vector.broadcast %8 : vector<1x128xf32> to vector<8x128xf32>
    %273 = arith.addf %271, %272 : vector<8x128xf32>
    %274 = arith.mulf %259, %273 : vector<8x128xf32>
    %275 = arith.addf %270, %274 : vector<8x128xf32>
    %276 = math.tanh %275 : vector<8x128xf32>
    %cst_84 = arith.constant 1.000000e+00 : f32
    %277 = vector.broadcast %cst_84 : f32 to vector<8x128xf32>
    %278 = arith.subf %277, %269 : vector<8x128xf32>
    %279 = arith.mulf %278, %276 : vector<8x128xf32>
    %280 = arith.mulf %269, %247 : vector<8x128xf32>
    %281 = arith.addf %279, %280 : vector<8x128xf32>
    %282 = arith.truncf %281 : vector<8x128xf32> to vector<8x128xbf16>
    %c0_85 = arith.constant 0 : index
    %c0_86 = arith.constant 0 : index
    %283 = vector.load %arg5[%c0_85, %c0_86] : memref<128x128xbf16, #tpu.memory_space<vmem>>, vector<128x128xbf16>
    %cst_87 = arith.constant dense<0.000000e+00> : vector<8x128xf32>
    %284 = tpu.matmul %282, %283, %cst_87 {dimension_numbers = #tpu.dot_dimension_numbers<[1], [0], [0], [1], [0, 0, 1, 1], [], []>} : vector<8x128xbf16>, vector<128x128xbf16>, vector<8x128xf32> -> vector<8x128xf32>
    %c0_88 = arith.constant 0 : index
    %c0_89 = arith.constant 0 : index
    %285 = vector.load %arg6[%c0_88, %c0_89] : memref<1x128xf32, #tpu.memory_space<vmem>>, vector<1x128xf32>
    %286 = vector.broadcast %285 : vector<1x128xf32> to vector<8x128xf32>
    %287 = arith.addf %284, %286 : vector<8x128xf32>
    %c0_90 = arith.constant 0 : index
    %c0_91 = arith.constant 0 : index
    %288 = vector.load %arg7[%c0_90, %c0_91] : memref<8x128xf32, #tpu.memory_space<vmem>>, vector<8x128xf32>
    tpu.vector_store %arg7[%c0_90, %c0_91], %287 {strides = array<i32>} : memref<8x128xf32, #tpu.memory_space<vmem>>, vector<8x128xf32>,
    return
  }
}

</mosaic_0001>

<llo_original>
// kernel: rnn_conditioner.1
$region0: #{rnn_conditioner.1}
  #allocation0 [shape = 'u32[]', space=smem, size = 0x4, offset = 0x4, fixed_abs, tag = 'smem constant byte address 0x4 - core index']
  #allocation1 [shape = 'u32[144,128]{1,0:T(1,128)}', space=vmem, size = 0x12000, scoped, tag = 'internal scratch']
  #allocation2 [shape = 'f32[64,384]{1,0:T(8,128)}', space=vmem, size = 0x18000, scoped, tag = 'scratch operand']
  %s0 = inlined_call_operand.vmem [shape: bf16[64,128], index: 0, kind: input, shape index: {}]
  %s1 = inlined_call_operand.hbm [shape: bf16[128,384], index: 1, kind: input, shape index: {}]
  %s2 = inlined_call_operand.hbm [shape: f32[128,384], index: 2, kind: input, shape index: {}]
  %s3 = inlined_call_operand.vmem [shape: f32[1,384], index: 3, kind: input, shape index: {}]
  %s4 = inlined_call_operand.vmem [shape: f32[1,128], index: 4, kind: input, shape index: {}]
  %s5 = inlined_call_operand.vmem [shape: bf16[128,128], index: 5, kind: input, shape index: {}]
  %s6 = inlined_call_operand.vmem [shape: f32[1,128], index: 6, kind: input, shape index: {}]
  %s7 = inlined_call_operand.vmem [shape: f32[8,128], index: 7, kind: output, shape index: {}]
  %s8 = sld [smem:[#allocation0]]
  $region46: #{rnn_conditioner.1} parent=0
    _
  %s10 = ssub.s32 1, %s8
  %s11 = scalar_select 0, %s10, %s8
  $region1: #{rnn_conditioner.1} parent=0
    #allocation3 [shape = 'u8[98304]{0}', space=vmem, size = 0x18000, scoped, tag = 'input window, operand 1, single buffered']
    #allocation4 [shape = 's32[1]{0}', space=sflag, size = 0x4, scoped, tag = 'scoped memory for rnn_conditioner.1']
    #allocation5 [shape = 'u8[196608]{0}', space=vmem, size = 0x30000, scoped, tag = 'input window, operand 2, single buffered']
    #allocation6 [shape = 's32[1]{0}', space=sflag, size = 0x4, scoped, tag = 'scoped memory for rnn_conditioner.1']
    %12 = vsyncpa [#allocation4], 0
    %13 = vsyncpa [#allocation6], 0
    // Predicated region
    $region2: #{rnn_conditioner.1} parent=1 // pred_check
      _
    $region3: #{rnn_conditioner.1} parent=1 // pred_check_branch
      %15 = sbr.rel (0) target = $region5
    $region4: #{rnn_conditioner.1} parent=1 // pred_region
      _
    $region5: #{rnn_conditioner.1} parent=1 // pred_fallthru
      _
    // Predicated region
    $region6: #{rnn_conditioner.1} parent=1 // pred_check
      _
    $region7: #{rnn_conditioner.1} parent=1 // pred_check_branch
      %17 = sbr.rel (0) target = $region9
    $region8: #{rnn_conditioner.1} parent=1 // pred_region
      %s19 = ssub.s32 3072, 3072
      %20 = vsyncadd [#allocation4], %s19
      %s21 = sshll.u32 [#allocation3], 4
      %s22 = int_to_ptr.vmem [resolvable:$true] %s21
      %27 = dma.hbm_to_vmem [thread:$0]  %s1, 3072, %s22, [#allocation4], 192, 192, 12
    $region9: #{rnn_conditioner.1} parent=1 // pred_fallthru
      _
    // Predicated region
    $region10: #{rnn_conditioner.1} parent=1 // pred_check
      _
    $region11: #{rnn_conditioner.1} parent=1 // pred_check_branch
      %29 = sbr.rel (0) target = $region13
    $region12: #{rnn_conditioner.1} parent=1 // pred_region
      %s31 = ssub.s32 6144, 6144
      %32 = vsyncadd [#allocation6], %s31
      %s33 = sshll.u32 [#allocation5], 4
      %s34 = int_to_ptr.vmem [resolvable:$true] %s33
      %39 = dma.hbm_to_vmem [thread:$0]  %s2, 6144, %s34, [#allocation6], 384, 384, 24
    $region13: #{rnn_conditioner.1} parent=1 // pred_fallthru
      _
    // Predicated region
    $region14: #{rnn_conditioner.1} parent=1 // pred_check
      _
    $region15: #{rnn_conditioner.1} parent=1 // pred_check_branch
      %41 = sbr.rel (0) target = $region17
    $region16: #{rnn_conditioner.1} parent=1 // pred_region
      _
    $region17: #{rnn_conditioner.1} parent=1 // pred_fallthru
      _
    // Predicated region
    $region18: #{rnn_conditioner.1} parent=1 // pred_check
      _
    $region19: #{rnn_conditioner.1} parent=1 // pred_check_branch
      %43 = sbr.rel (0) target = $region21
    $region20: #{rnn_conditioner.1} parent=1 // pred_region
      _
    $region21: #{rnn_conditioner.1} parent=1 // pred_fallthru
      _
    // Predicated region
    $region22: #{rnn_conditioner.1} parent=1 // pred_check
      _
    $region23: #{rnn_conditioner.1} parent=1 // pred_check_branch
      %45 = sbr.rel (0) target = $region25
    $region24: #{rnn_conditioner.1} parent=1 // pred_region
      _
    $region25: #{rnn_conditioner.1} parent=1 // pred_fallthru
      _
    // Predicated region
    $region26: #{rnn_conditioner.1} parent=1 // pred_check
      _
    $region27: #{rnn_conditioner.1} parent=1 // pred_check_branch
      %47 = sbr.rel (0) target = $region29
    $region28: #{rnn_conditioner.1} parent=1 // pred_region
      _
    $region29: #{rnn_conditioner.1} parent=1 // pred_fallthru
      _
    // Predicated region
    $region30: #{rnn_conditioner.1} parent=1 // pred_check
      _
    $region31: #{rnn_conditioner.1} parent=1 // pred_check_branch
      %49 = sbr.rel (0) target = $region33
    $region32: #{rnn_conditioner.1} parent=1 // pred_region
      %50 = dma.done [#allocation4], 3072
    $region33: #{rnn_conditioner.1} parent=1 // pred_fallthru
      _
    // Predicated region
    $region34: #{rnn_conditioner.1} parent=1 // pred_check
      _
    $region35: #{rnn_conditioner.1} parent=1 // pred_check_branch
      %52 = sbr.rel (0) target = $region37
    $region36: #{rnn_conditioner.1} parent=1 // pred_region
      %53 = dma.done [#allocation6], 6144
    $region37: #{rnn_conditioner.1} parent=1 // pred_fallthru
      _
    %v55 = vld [vmem:[%s0] sm:$0xf]
    %v56 = vld [vmem:[%s0 + $0x4] sm:$0xf]
    %v57 = vld [vmem:[%s0 + $0x8] sm:$0xf]
    %v58 = vld [vmem:[%s0 + $0xc] sm:$0xf]
    %v59 = vld [vmem:[%s0 + $0x10] sm:$0xf]
    %v60 = vld [vmem:[%s0 + $0x14] sm:$0xf]
    %v61 = vld [vmem:[%s0 + $0x18] sm:$0xf]
    %v62 = vld [vmem:[%s0 + $0x1c] sm:$0xf]
    %v63 = vld [vmem:[#allocation3] sm:$0xff]
    %v64 = vld [vmem:[#allocation3 + $0x8] sm:$0xf]
    %v65 = vld [vmem:[#allocation3 + $0xc] sm:$0xff]
    %v66 = vld [vmem:[#allocation3 + $0x14] sm:$0xf]
    %v67 = vld [vmem:[#allocation3 + $0x18] sm:$0xff]
    %v68 = vld [vmem:[#allocation3 + $0x20] sm:$0xf]
    %v69 = vld [vmem:[#allocation3 + $0x24] sm:$0xff]
    %v70 = vld [vmem:[#allocation3 + $0x2c] sm:$0xf]
    %v71 = vld [vmem:[#allocation3 + $0x30] sm:$0xff]
    %v72 = vld [vmem:[#allocation3 + $0x38] sm:$0xf]
    %v73 = vld [vmem:[#allocation3 + $0x3c] sm:$0xff]
    %v74 = vld [vmem:[#allocation3 + $0x44] sm:$0xf]
    %v75 = vld [vmem:[#allocation3 + $0x48] sm:$0xff]
    %v76 = vld [vmem:[#allocation3 + $0x50] sm:$0xf]
    %v77 = vld [vmem:[#allocation3 + $0x54] sm:$0xff]
    %v78 = vld [vmem:[#allocation3 + $0x5c] sm:$0xf]
    %v79 = vld [vmem:[#allocation3 + $0x60] sm:$0xff]
    %v80 = vld [vmem:[#allocation3 + $0x68] sm:$0xf]
    %v81 = vld [vmem:[#allocation3 + $0x6c] sm:$0xff]
    %v82 = vld [vmem:[#allocation3 + $0x74] sm:$0xf]
    %v83 = vld [vmem:[#allocation3 + $0x78] sm:$0xff]
    %v84 = vld [vmem:[#allocation3 + $0x80] sm:$0xf]
    %v85 = vld [vmem:[#allocation3 + $0x84] sm:$0xff]
    %v86 = vld [vmem:[#allocation3 + $0x8c] sm:$0xf]
    %v87 = vld [vmem:[#allocation3 + $0x90] sm:$0xff]
    %v88 = vld [vmem:[#allocation3 + $0x98] sm:$0xf]
    %v89 = vld [vmem:[#allocation3 + $0x9c] sm:$0xff]
    %v90 = vld [vmem:[#allocation3 + $0xa4] sm:$0xf]
    %v91 = vld [vmem:[#allocation3 + $0xa8] sm:$0xff]
    %v92 = vld [vmem:[#allocation3 + $0xb0] sm:$0xf]
    %v93 = vld [vmem:[#allocation3 + $0xb4] sm:$0xff]
    %v94 = vld [vmem:[#allocation3 + $0xbc] sm:$0xf]
    %v95 = vld [vmem:[%s3] sm:$0x7]
    %v97 = vlaneseq
    %v98 = vshrl.u32 %v97, 7
    %v99 = vsub.s32 0, %v98
    %v100 = vrot.slane %v95, %v99
    %v101 = vlaneseq
    %v102 = vshrl.u32 %v101, 7
    %v103 = vsub.s32 1, %v102
    %v104 = vrot.slane %v95, %v103
    %v105 = vlaneseq
    %v106 = vshrl.u32 %v105, 7
    %v107 = vsub.s32 2, %v106
    %v108 = vrot.slane %v95, %v107
    %v120 = vunpack.c.l.b16 %v55
    %v121 = vunpack.c.l.b16 %v56
    %v122 = vunpack.c.l.b16 %v57
    %v123 = vunpack.c.l.b16 %v58
    %v124 = vunpack.c.l.b16 %v59
    %v125 = vunpack.c.l.b16 %v60
    %v126 = vunpack.c.l.b16 %v61
    %v127 = vunpack.c.l.b16 %v62
    %v128 = vpack.c.b16 %v121, %v120
    %v129 = vpack.c.b16 %v123, %v122
    %v130 = vpack.c.b16 %v125, %v124
    %v131 = vpack.c.b16 %v127, %v126
    %v168 = vunpack.c.l.b16 %v63
    %v169 = vunpack.c.h.b16 %v63
    %v170 = vunpack.c.l.b16 %v64
    %v171 = vunpack.c.l.b16 %v65
    %v172 = vunpack.c.h.b16 %v65
    %v173 = vunpack.c.l.b16 %v66
    %v174 = vunpack.c.l.b16 %v67
    %v175 = vunpack.c.h.b16 %v67
    %v176 = vunpack.c.l.b16 %v68
    %v177 = vunpack.c.l.b16 %v69
    %v178 = vunpack.c.h.b16 %v69
    %v179 = vunpack.c.l.b16 %v70
    %v180 = vunpack.c.l.b16 %v71
    %v181 = vunpack.c.h.b16 %v71
    %v182 = vunpack.c.l.b16 %v72
    %v183 = vunpack.c.l.b16 %v73
    %v184 = vunpack.c.h.b16 %v73
    %v185 = vunpack.c.l.b16 %v74
    %v186 = vunpack.c.l.b16 %v75
    %v187 = vunpack.c.h.b16 %v75
    %v188 = vunpack.c.l.b16 %v76
    %v189 = vunpack.c.l.b16 %v77
    %v190 = vunpack.c.h.b16 %v77
    %v191 = vunpack.c.l.b16 %v78
    %v192 = vunpack.c.l.b16 %v79
    %v193 = vunpack.c.h.b16 %v79
    %v194 = vunpack.c.l.b16 %v80
    %v195 = vunpack.c.l.b16 %v81
    %v196 = vunpack.c.h.b16 %v81
    %v197 = vunpack.c.l.b16 %v82
    %v198 = vunpack.c.l.b16 %v83
    %v199 = vunpack.c.h.b16 %v83
    %v200 = vunpack.c.l.b16 %v84
    %v201 = vunpack.c.l.b16 %v85
    %v202 = vunpack.c.h.b16 %v85
    %v203 = vunpack.c.l.b16 %v86
    %v204 = vunpack.c.l.b16 %v87
    %v205 = vunpack.c.h.b16 %v87
    %v206 = vunpack.c.l.b16 %v88
    %v207 = vunpack.c.l.b16 %v89
    %v208 = vunpack.c.h.b16 %v89
    %v209 = vunpack.c.l.b16 %v90
    %v210 = vunpack.c.l.b16 %v91
    %v211 = vunpack.c.h.b16 %v91
    %v212 = vunpack.c.l.b16 %v92
    %v213 = vunpack.c.l.b16 %v93
    %v214 = vunpack.c.h.b16 %v93
    %v215 = vunpack.c.l.b16 %v94
    %v216 = vpack.c.b16 %v171, %v168
    %v217 = vpack.c.b16 %v172, %v169
    %v218 = vpack.c.b16 %v173, %v170
    %v219 = vpack.c.b16 %v177, %v174
    %v220 = vpack.c.b16 %v178, %v175
    %v221 = vpack.c.b16 %v179, %v176
    %v222 = vpack.c.b16 %v183, %v180
    %v223 = vpack.c.b16 %v184, %v181
    %v224 = vpack.c.b16 %v185, %v182
    %v225 = vpack.c.b16 %v189, %v186
    %v226 = vpack.c.b16 %v190, %v187
    %v227 = vpack.c.b16 %v191, %v188
    %v228 = vpack.c.b16 %v195, %v192
    %v229 = vpack.c.b16 %v196, %v193
    %v230 = vpack.c.b16 %v197, %v194
    %v231 = vpack.c.b16 %v201, %v198
    %v232 = vpack.c.b16 %v202, %v199
    %v233 = vpack.c.b16 %v203, %v200
    %v234 = vpack.c.b16 %v207, %v204
    %v235 = vpack.c.b16 %v208, %v205
    %v236 = vpack.c.b16 %v209, %v206
    %v237 = vpack.c.b16 %v213, %v210
    %v238 = vpack.c.b16 %v214, %v211
    %v239 = vpack.c.b16 %v215, %v212
    %264 = vmatprep.subr.bf16.mxu0 %v217
    %265 = vmatpush1.bf16.msra.mxu0 %v216
    %266 = vmatprep.subr.bf16.mxu0 %v220
    %267 = vmatpush1.bf16.msra.mxu0 %v219
    %268 = vmatprep.subr.bf16.mxu0 %v223
    %269 = vmatpush1.bf16.msra.mxu0 %v222
    %270 = vmatprep.subr.bf16.mxu0 %v226
    %271 = vmatpush1.bf16.msra.mxu0 %v225
    %272 = vmatprep.subr.bf16.mxu0 %v229
    %273 = vmatpush1.bf16.msra.mxu0 %v228
    %274 = vmatprep.subr.bf16.mxu0 %v232
    %275 = vmatpush1.bf16.msra.mxu0 %v231
    %276 = vmatprep.subr.bf16.mxu0 %v235
    %277 = vmatpush1.bf16.msra.mxu0 %v234
    %278 = vmatprep.subr.bf16.mxu0 %v238
    %279 = vmatpush1.bf16.msra.mxu0 %v237
    %280 = vmatprep.subr.bf16.mxu0 0
    %281 = vmatpush1.bf16.msra.mxu0 0
    %282 = vmatprep.subr.bf16.mxu0 0
    %283 = vmatpush1.bf16.msra.mxu0 0
    %284 = vmatprep.subr.bf16.mxu0 0
    %285 = vmatpush1.bf16.msra.mxu0 0
    %286 = vmatprep.subr.bf16.mxu0 0
    %287 = vmatpush1.bf16.msra.mxu0 0
    %288 = vmatprep.subr.bf16.mxu0 0
    %289 = vmatpush1.bf16.msra.mxu0 0
    %290 = vmatprep.subr.bf16.mxu0 0
    %291 = vmatpush1.bf16.msra.mxu0 0
    %292 = vmatprep.subr.bf16.mxu0 0
    %293 = vmatpush1.bf16.msra.mxu0 0
    %294 = vmatprep.subr.bf16.mxu0 0
    %295 = vmatpush1.bf16.msra.mxu0 0
    %296 = vmatprep.mubr.bf16.mxu0 0
    %297 = vmatmul.mubr.bf16.gmra.mrb[0].mxu0 %v128
    %v298 = vpop.f32.mrb[0].mxu0
    %v299 = vadd.f32 %v100, %v298
    %v300 = vpop.f32.mrb[0].mxu0
    %v301 = vadd.f32 %v104, %v300
    %v302 = vpop.f32.mrb[0].mxu0
    %v303 = vadd.f32 %v100, %v302
    %v304 = vpop.f32.mrb[0].mxu0
    %v305 = vadd.f32 %v104, %v304
    %306 = vmatprep.mubr.bf16.mxu0 0
    %307 = vmatmul.mubr.bf16.gmra.mrb[0].mxu0 %v129
    %v308 = vpop.f32.mrb[0].mxu0
    %v309 = vadd.f32 %v100, %v308
    %v310 = vpop.f32.mrb[0].mxu0
    %v311 = vadd.f32 %v104, %v310
    %v312 = vpop.f32.mrb[0].mxu0
    %v313 = vadd.f32 %v100, %v312
    %v314 = vpop.f32.mrb[0].mxu0
    %v315 = vadd.f32 %v104, %v314
    %316 = vmatprep.mubr.bf16.mxu0 0
    %317 = vmatmul.mubr.bf16.gmra.mrb[0].mxu0 %v130
    %v318 = vpop.f32.mrb[0].mxu0
    %v319 = vadd.f32 %v100, %v318
    %v320 = vpop.f32.mrb[0].mxu0
    %v321 = vadd.f32 %v104, %v320
    %v322 = vpop.f32.mrb[0].mxu0
    %v323 = vadd.f32 %v100, %v322
    %v324 = vpop.f32.mrb[0].mxu0
    %v325 = vadd.f32 %v104, %v324
    %326 = vmatprep.mubr.bf16.mxu0 0
    %327 = vmatmul.mubr.bf16.gmra.mrb[0].mxu0 %v131
    %v328 = vpop.f32.mrb[0].mxu0
    %v329 = vadd.f32 %v100, %v328
    %v330 = vpop.f32.mrb[0].mxu0
    %v331 = vadd.f32 %v104, %v330
    %v332 = vpop.f32.mrb[0].mxu0
    %v333 = vadd.f32 %v100, %v332
    %v334 = vpop.f32.mrb[0].mxu0
    %v335 = vadd.f32 %v104, %v334
    %336 = vdwg.mxu0
    %337 = vmatprep.subr.bf16.mxu0 0
    %338 = vmatpush1.bf16.msra.mxu0 %v218
    %339 = vmatprep.subr.bf16.mxu0 0
    %340 = vmatpush1.bf16.msra.mxu0 %v221
    %341 = vmatprep.subr.bf16.mxu0 0
    %342 = vmatpush1.bf16.msra.mxu0 %v224
    %343 = vmatprep.subr.bf16.mxu0 0
    %344 = vmatpush1.bf16.msra.mxu0 %v227
    %345 = vmatprep.subr.bf16.mxu0 0
    %346 = vmatpush1.bf16.msra.mxu0 %v230
    %347 = vmatprep.subr.bf16.mxu0 0
    %348 = vmatpush1.bf16.msra.mxu0 %v233
    %349 = vmatprep.subr.bf16.mxu0 0
    %350 = vmatpush1.bf16.msra.mxu0 %v236
    %351 = vmatprep.subr.bf16.mxu0 0
    %352 = vmatpush1.bf16.msra.mxu0 %v239
    %353 = vmatprep.subr.bf16.mxu0 0
    %354 = vmatpush1.bf16.msra.mxu0 0
    %355 = vmatprep.subr.bf16.mxu0 0
    %356 = vmatpush1.bf16.msra.mxu0 0
    %357 = vmatprep.subr.bf16.mxu0 0
    %358 = vmatpush1.bf16.msra.mxu0 0
    %359 = vmatprep.subr.bf16.mxu0 0
    %360 = vmatpush1.bf16.msra.mxu0 0
    %361 = vmatprep.subr.bf16.mxu0 0
    %362 = vmatpush1.bf16.msra.mxu0 0
    %363 = vmatprep.subr.bf16.mxu0 0
    %364 = vmatpush1.bf16.msra.mxu0 0
    %365 = vmatprep.subr.bf16.mxu0 0
    %366 = vmatpush1.bf16.msra.mxu0 0
    %367 = vmatprep.subr.bf16.mxu0 0
    %368 = vmatpush1.bf16.msra.mxu0 0
    %369 = vmatprep.mubr.bf16.mxu0 0
    %370 = vmatmul.mubr.bf16.gmra.mrb[0].mxu0 %v128
    %v371 = vpop.f32.mrb[0].mxu0
    %v372 = vadd.f32 %v108, %v371
    %v373 = vpop.f32.mrb[0].mxu0
    %v374 = vpop.f32.mrb[0].mxu0
    %v375 = vadd.f32 %v108, %v374
    %v376 = vpop.f32.mrb[0].mxu0
    %377 = vmatprep.mubr.bf16.mxu0 0
    %378 = vmatmul.mubr.bf16.gmra.mrb[0].mxu0 %v129
    %v379 = vpop.f32.mrb[0].mxu0
    %v380 = vadd.f32 %v108, %v379
    %v381 = vpop.f32.mrb[0].mxu0
    %v382 = vpop.f32.mrb[0].mxu0
    %v383 = vadd.f32 %v108, %v382
    %v384 = vpop.f32.mrb[0].mxu0
    %385 = vmatprep.mubr.bf16.mxu0 0
    %386 = vmatmul.mubr.bf16.gmra.mrb[0].mxu0 %v130
    %v387 = vpop.f32.mrb[0].mxu0
    %v388 = vadd.f32 %v108, %v387
    %v389 = vpop.f32.mrb[0].mxu0
    %v390 = vpop.f32.mrb[0].mxu0
    %v391 = vadd.f32 %v108, %v390
    %v392 = vpop.f32.mrb[0].mxu0
    %393 = vmatprep.mubr.bf16.mxu0 0
    %394 = vmatmul.mubr.bf16.gmra.mrb[0].mxu0 %v131
    %v395 = vpop.f32.mrb[0].mxu0
    %v396 = vadd.f32 %v108, %v395
    %v397 = vpop.f32.mrb[0].mxu0
    %v398 = vpop.f32.mrb[0].mxu0
    %v399 = vadd.f32 %v108, %v398
    %v400 = vpop.f32.mrb[0].mxu0
    %401 = vdwg.mxu0
    %402 = vst [vmem:[#allocation2] sm:$0xff] %v299
    %403 = vst [vmem:[#allocation2 + $0x8] sm:$0xff] %v301
    %404 = vst [vmem:[#allocation2 + $0x10] sm:$0xff] %v372
    %405 = vst [vmem:[#allocation2 + $0x18] sm:$0xff] %v303
    %406 = vst [vmem:[#allocation2 + $0x20] sm:$0xff] %v305
    %407 = vst [vmem:[#allocation2 + $0x28] sm:$0xff] %v375
    %408 = vst [vmem:[#allocation2 + $0x30] sm:$0xff] %v309
    %409 = vst [vmem:[#allocation2 + $0x38] sm:$0xff] %v311
    %410 = vst [vmem:[#allocation2 + $0x40] sm:$0xff] %v380
    %411 = vst [vmem:[#allocation2 + $0x48] sm:$0xff] %v313
    %412 = vst [vmem:[#allocation2 + $0x50] sm:$0xff] %v315
    %413 = vst [vmem:[#allocation2 + $0x58] sm:$0xff] %v383
    %414 = vst [vmem:[#allocation2 + $0x60] sm:$0xff] %v319
    %415 = vst [vmem:[#allocation2 + $0x68] sm:$0xff] %v321
    %416 = vst [vmem:[#allocation2 + $0x70] sm:$0xff] %v388
    %417 = vst [vmem:[#allocation2 + $0x78] sm:$0xff] %v323
    %418 = vst [vmem:[#allocation2 + $0x80] sm:$0xff] %v325
    %419 = vst [vmem:[#allocation2 + $0x88] sm:$0xff] %v391
    %420 = vst [vmem:[#allocation2 + $0x90] sm:$0xff] %v329
    %421 = vst [vmem:[#allocation2 + $0x98] sm:$0xff] %v331
    %422 = vst [vmem:[#allocation2 + $0xa0] sm:$0xff] %v396
    %423 = vst [vmem:[#allocation2 + $0xa8] sm:$0xff] %v333
    %424 = vst [vmem:[#allocation2 + $0xb0] sm:$0xff] %v335
    %425 = vst [vmem:[#allocation2 + $0xb8] sm:$0xff] %v399
    %v426 = vld [vmem:[#allocation5] sm:$0xff]
    %v427 = vld [vmem:[#allocation5 + $0x8] sm:$0xff]
    %v428 = vld [vmem:[#allocation5 + $0x10] sm:$0xff]
    %v429 = vld [vmem:[#allocation5 + $0x18] sm:$0xff]
    %v430 = vld [vmem:[#allocation5 + $0x20] sm:$0xff]
    %v431 = vld [vmem:[#allocation5 + $0x28] sm:$0xff]
    %v432 = vld [vmem:[#allocation5 + $0x30] sm:$0xff]
    %v433 = vld [vmem:[#allocation5 + $0x38] sm:$0xff]
    %v434 = vld [vmem:[#allocation5 + $0x40] sm:$0xff]
    %v435 = vld [vmem:[#allocation5 + $0x48] sm:$0xff]
    %v436 = vld [vmem:[#allocation5 + $0x50] sm:$0xff]
    %v437 = vld [vmem:[#allocation5 + $0x58] sm:$0xff]
    %v438 = vld [vmem:[#allocation5 + $0x60] sm:$0xff]
    %v439 = vld [vmem:[#allocation5 + $0x68] sm:$0xff]
    %v440 = vld [vmem:[#allocation5 + $0x70] sm:$0xff]
    %v441 = vld [vmem:[#allocation5 + $0x78] sm:$0xff]
    %v442 = vld [vmem:[#allocation5 + $0x80] sm:$0xff]
    %v443 = vld [vmem:[#allocation5 + $0x88] sm:$0xff]
    %v444 = vld [vmem:[#allocation5 + $0x90] sm:$0xff]
    %v445 = vld [vmem:[#allocation5 + $0x98] sm:$0xff]
    %v446 = vld [vmem:[#allocation5 + $0xa0] sm:$0xff]
    %v447 = vld [vmem:[#allocation5 + $0xa8] sm:$0xff]
    %v448 = vld [vmem:[#allocation5 + $0xb0] sm:$0xff]
    %v449 = vld [vmem:[#allocation5 + $0xb8] sm:$0xff]
    %v450 = vld [vmem:[#allocation5 + $0xc0] sm:$0xff]
    %v451 = vld [vmem:[#allocation5 + $0xc8] sm:$0xff]
    %v452 = vld [vmem:[#allocation5 + $0xd0] sm:$0xff]
    %v453 = vld [vmem:[#allocation5 + $0xd8] sm:$0xff]
    %v454 = vld [vmem:[#allocation5 + $0xe0] sm:$0xff]
    %v455 = vld [vmem:[#allocation5 + $0xe8] sm:$0xff]
    %v456 = vld [vmem:[#allocation5 + $0xf0] sm:$0xff]
    %v457 = vld [vmem:[#allocation5 + $0xf8] sm:$0xff]
    %v458 = vld [vmem:[#allocation5 + $0x100] sm:$0xff]
    %v459 = vld [vmem:[#allocation5 + $0x108] sm:$0xff]
    %v460 = vld [vmem:[#allocation5 + $0x110] sm:$0xff]
    %v461 = vld [vmem:[#allocation5 + $0x118] sm:$0xff]
    %v462 = vld [vmem:[#allocation5 + $0x120] sm:$0xff]
    %v463 = vld [vmem:[#allocation5 + $0x128] sm:$0xff]
    %v464 = vld [vmem:[#allocation5 + $0x130] sm:$0xff]
    %v465 = vld [vmem:[#allocation5 + $0x138] sm:$0xff]
    %v466 = vld [vmem:[#allocation5 + $0x140] sm:$0xff]
    %v467 = vld [vmem:[#allocation5 + $0x148] sm:$0xff]
    %v468 = vld [vmem:[#allocation5 + $0x150] sm:$0xff]
    %v469 = vld [vmem:[#allocation5 + $0x158] sm:$0xff]
    %v470 = vld [vmem:[#allocation5 + $0x160] sm:$0xff]
    %v471 = vld [vmem:[#allocation5 + $0x168] sm:$0xff]
    %v472 = vld [vmem:[#allocation5 + $0x170] sm:$0xff]
    %v473 = vld [vmem:[#allocation5 + $0x178] sm:$0xff]
    %v474 = vld [vmem:[%s4] sm:$0x1]
    %v475 = vld [vmem:[#allocation2] sm:$0xff]
    %v476 = vld [vmem:[#allocation2 + $0x8] sm:$0xff]
    %v477 = vld [vmem:[#allocation2 + $0x10] sm:$0xff]
    %478 = vmatprep.subr.mxu0 %v427
    %479 = vmatpush1.msra.mxu0 %v426
    %480 = vmatprep.subr.mxu0 %v430
    %481 = vmatpush1.msra.mxu0 %v429
    %482 = vmatprep.subr.mxu0 %v433
    %483 = vmatpush1.msra.mxu0 %v432
    %484 = vmatprep.subr.mxu0 %v436
    %485 = vmatpush1.msra.mxu0 %v435
    %486 = vmatprep.subr.mxu0 %v439
    %487 = vmatpush1.msra.mxu0 %v438
    %488 = vmatprep.subr.mxu0 %v442
    %489 = vmatpush1.msra.mxu0 %v441
    %490 = vmatprep.subr.mxu0 %v445
    %491 = vmatpush1.msra.mxu0 %v444
    %492 = vmatprep.subr.mxu0 %v448
    %493 = vmatpush1.msra.mxu0 %v447
    %494 = vmatprep.subr.mxu0 %v451
    %495 = vmatpush1.msra.mxu0 %v450
    %496 = vmatprep.subr.mxu0 %v454
    %497 = vmatpush1.msra.mxu0 %v453
    %498 = vmatprep.subr.mxu0 %v457
    %499 = vmatpush1.msra.mxu0 %v456
    %500 = vmatprep.subr.mxu0 %v460
    %501 = vmatpush1.msra.mxu0 %v459
    %502 = vmatprep.subr.mxu0 %v463
    %503 = vmatpush1.msra.mxu0 %v462
    %504 = vmatprep.subr.mxu0 %v466
    %505 = vmatpush1.msra.mxu0 %v465
    %506 = vmatprep.subr.mxu0 %v469
    %507 = vmatpush1.msra.mxu0 %v468
    %508 = vmatprep.subr.mxu0 %v472
    %509 = vmatpush1.msra.mxu0 %v471
    %510 = vmatprep.subr.mxu0 0.0
    %511 = vmatpush1.msra.mxu0 0.0
    %512 = vmatprep.subr.mxu0 0.0
    %513 = vmatpush1.msra.mxu0 0.0
    %514 = vmatprep.subr.mxu0 0.0
    %515 = vmatpush1.msra.mxu0 0.0
    %516 = vmatprep.subr.mxu0 0.0
    %517 = vmatpush1.msra.mxu0 0.0
    %518 = vmatprep.subr.mxu0 0.0
    %519 = vmatpush1.msra.mxu0 0.0
    %520 = vmatprep.subr.mxu0 0.0
    %521 = vmatpush1.msra.mxu0 0.0
    %522 = vmatprep.subr.mxu0 0.0
    %523 = vmatpush1.msra.mxu0 0.0
    %524 = vmatprep.subr.mxu0 0.0
    %525 = vmatpush1.msra.mxu0 0.0
    %526 = vmatprep.subr.mxu0 0.0
    %527 = vmatpush1.msra.mxu0 0.0
    %528 = vmatprep.subr.mxu0 0.0
    %529 = vmatpush1.msra.mxu0 0.0
    %530 = vmatprep.subr.mxu0 0.0
    %531 = vmatpush1.msra.mxu0 0.0
    %532 = vmatprep.subr.mxu0 0.0
    %533 = vmatpush1.msra.mxu0 0.0
    %534 = vmatprep.subr.mxu0 0.0
    %535 = vmatpush1.msra.mxu0 0.0
    %536 = vmatprep.subr.mxu0 0.0
    %537 = vmatpush1.msra.mxu0 0.0
    %538 = vmatprep.subr.mxu0 0.0
    %539 = vmatpush1.msra.mxu0 0.0
    %540 = vmatprep.subr.mxu0 0.0
    %541 = vmatpush1.msra.mxu0 0.0
    %542 = vmatprep.mubr.f32.mxu0 0.0
    %543 = vmatmul.mubr.f32.gmra.mrb[0].mxu0 0.0
    %v544 = vpop.f32.mrb[0].mxu0
    %v545 = vadd.f32 0.0, %v544
    %v546 = vpop.f32.mrb[0].mxu0
    %v547 = vadd.f32 0.0, %v546
    %548 = vdwg.mxu0
    %549 = vmatprep.subr.mxu0 0.0
    %550 = vmatpush1.msra.mxu0 %v428
    %551 = vmatprep.subr.mxu0 0.0
    %552 = vmatpush1.msra.mxu0 %v431
    %553 = vmatprep.subr.mxu0 0.0
    %554 = vmatpush1.msra.mxu0 %v434
    %555 = vmatprep.subr.mxu0 0.0
    %556 = vmatpush1.msra.mxu0 %v437
    %557 = vmatprep.subr.mxu0 0.0
    %558 = vmatpush1.msra.mxu0 %v440
    %559 = vmatprep.subr.mxu0 0.0
    %560 = vmatpush1.msra.mxu0 %v443
    %561 = vmatprep.subr.mxu0 0.0
    %562 = vmatpush1.msra.mxu0 %v446
    %563 = vmatprep.subr.mxu0 0.0
    %564 = vmatpush1.msra.mxu0 %v449
    %565 = vmatprep.subr.mxu0 0.0
    %566 = vmatpush1.msra.mxu0 %v452
    %567 = vmatprep.subr.mxu0 0.0
    %568 = vmatpush1.msra.mxu0 %v455
    %569 = vmatprep.subr.mxu0 0.0
    %570 = vmatpush1.msra.mxu0 %v458
    %571 = vmatprep.subr.mxu0 0.0
    %572 = vmatpush1.msra.mxu0 %v461
    %573 = vmatprep.subr.mxu0 0.0
    %574 = vmatpush1.msra.mxu0 %v464
    %575 = vmatprep.subr.mxu0 0.0
    %576 = vmatpush1.msra.mxu0 %v467
    %577 = vmatprep.subr.mxu0 0.0
    %578 = vmatpush1.msra.mxu0 %v470
    %579 = vmatprep.subr.mxu0 0.0
    %580 = vmatpush1.msra.mxu0 %v473
    %581 = vmatprep.subr.mxu0 0.0
    %582 = vmatpush1.msra.mxu0 0.0
    %583 = vmatprep.subr.mxu0 0.0
    %584 = vmatpush1.msra.mxu0 0.0
    %585 = vmatprep.subr.mxu0 0.0
    %586 = vmatpush1.msra.mxu0 0.0
    %587 = vmatprep.subr.mxu0 0.0
    %588 = vmatpush1.msra.mxu0 0.0
    %589 = vmatprep.subr.mxu0 0.0
    %590 = vmatpush1.msra.mxu0 0.0
    %591 = vmatprep.subr.mxu0 0.0
    %592 = vmatpush1.msra.mxu0 0.0
    %593 = vmatprep.subr.mxu0 0.0
    %594 = vmatpush1.msra.mxu0 0.0
    %595 = vmatprep.subr.mxu0 0.0
    %596 = vmatpush1.msra.mxu0 0.0
    %597 = vmatprep.subr.mxu0 0.0
    %598 = vmatpush1.msra.mxu0 0.0
    %599 = vmatprep.subr.mxu0 0.0
    %600 = vmatpush1.msra.mxu0 0.0
    %601 = vmatprep.subr.mxu0 0.0
    %602 = vmatpush1.msra.mxu0 0.0
    %603 = vmatprep.subr.mxu0 0.0
    %604 = vmatpush1.msra.mxu0 0.0
    %605 = vmatprep.subr.mxu0 0.0
    %606 = vmatpush1.msra.mxu0 0.0
    %607 = vmatprep.subr.mxu0 0.0
    %608 = vmatpush1.msra.mxu0 0.0
    %609 = vmatprep.subr.mxu0 0.0
    %610 = vmatpush1.msra.mxu0 0.0
    %611 = vmatprep.subr.mxu0 0.0
    %612 = vmatpush1.msra.mxu0 0.0
    %613 = vmatprep.mubr.f32.mxu0 0.0
    %614 = vmatmul.mubr.f32.gmra.mrb[0].mxu0 0.0
    %v615 = vpop.f32.mrb[0].mxu0
    %v616 = vadd.f32 0.0, %v615
    %v617 = vpop.f32.mrb[0].mxu0
    %618 = vdwg.mxu0
    %v619 = vadd.f32 %v475, %v545
    %v620 = vmul.f32 %v619, 0.5
    %v621 = vtanh.pop %v620
    %v622 = vadd.f32 %v621, 1.0
    %v623 = vmul.f32 %v622, 0.5
    %v624 = vadd.f32 %v476, %v547
    %v625 = vmul.f32 %v624, 0.5
    %v626 = vtanh.pop %v625
    %v627 = vadd.f32 %v626, 1.0
    %v628 = vmul.f32 %v627, 0.5
    %v630 = vlaneseq
    %v631 = vshrl.u32 %v630, 7
    %v632 = vsub.s32 0, %v631
    %v633 = vrot.slane %v474, %v632
    %v635 = vadd.f32 %v616, %v633
    %v636 = vmul.f32 %v623, %v635
    %v637 = vadd.f32 %v477, %v636
    %v638 = vtanh.pop %v637
    %v639 = vsub.f32 1.0, %v628
    %v640 = vmul.f32 %v639, %v638
    %v641 = vmul.f32 %v628, 0.0
    %v642 = vadd.f32 %v640, %v641
    %v643 = vld [vmem:[#allocation2 + $0x18] sm:$0xff]
    %v644 = vld [vmem:[#allocation2 + $0x20] sm:$0xff]
    %v645 = vld [vmem:[#allocation2 + $0x28] sm:$0xff]
    %646 = vmatprep.subr.mxu0 %v427
    %647 = vmatpush1.msra.mxu0 %v426
    %648 = vmatprep.subr.mxu0 %v430
    %649 = vmatpush1.msra.mxu0 %v429
    %650 = vmatprep.subr.mxu0 %v433
    %651 = vmatpush1.msra.mxu0 %v432
    %652 = vmatprep.subr.mxu0 %v436
    %653 = vmatpush1.msra.mxu0 %v435
    %654 = vmatprep.subr.mxu0 %v439
    %655 = vmatpush1.msra.mxu0 %v438
    %656 = vmatprep.subr.mxu0 %v442
    %657 = vmatpush1.msra.mxu0 %v441
    %658 = vmatprep.subr.mxu0 %v445
    %659 = vmatpush1.msra.mxu0 %v444
    %660 = vmatprep.subr.mxu0 %v448
    %661 = vmatpush1.msra.mxu0 %v447
    %662 = vmatprep.subr.mxu0 %v451
    %663 = vmatpush1.msra.mxu0 %v450
    %664 = vmatprep.subr.mxu0 %v454
    %665 = vmatpush1.msra.mxu0 %v453
    %666 = vmatprep.subr.mxu0 %v457
    %667 = vmatpush1.msra.mxu0 %v456
    %668 = vmatprep.subr.mxu0 %v460
    %669 = vmatpush1.msra.mxu0 %v459
    %670 = vmatprep.subr.mxu0 %v463
    %671 = vmatpush1.msra.mxu0 %v462
    %672 = vmatprep.subr.mxu0 %v466
    %673 = vmatpush1.msra.mxu0 %v465
    %674 = vmatprep.subr.mxu0 %v469
    %675 = vmatpush1.msra.mxu0 %v468
    %676 = vmatprep.subr.mxu0 %v472
    %677 = vmatpush1.msra.mxu0 %v471
    %678 = vmatprep.subr.mxu0 0.0
    %679 = vmatpush1.msra.mxu0 0.0
    %680 = vmatprep.subr.mxu0 0.0
    %681 = vmatpush1.msra.mxu0 0.0
    %682 = vmatprep.subr.mxu0 0.0
    %683 = vmatpush1.msra.mxu0 0.0
    %684 = vmatprep.subr.mxu0 0.0
    %685 = vmatpush1.msra.mxu0 0.0
    %686 = vmatprep.subr.mxu0 0.0
    %687 = vmatpush1.msra.mxu0 0.0
    %688 = vmatprep.subr.mxu0 0.0
    %689 = vmatpush1.msra.mxu0 0.0
    %690 = vmatprep.subr.mxu0 0.0
    %691 = vmatpush1.msra.mxu0 0.0
    %692 = vmatprep.subr.mxu0 0.0
    %693 = vmatpush1.msra.mxu0 0.0
    %694 = vmatprep.subr.mxu0 0.0
    %695 = vmatpush1.msra.mxu0 0.0
    %696 = vmatprep.subr.mxu0 0.0
    %697 = vmatpush1.msra.mxu0 0.0
    %698 = vmatprep.subr.mxu0 0.0
    %699 = vmatpush1.msra.mxu0 0.0
    %700 = vmatprep.subr.mxu0 0.0
    %701 = vmatpush1.msra.mxu0 0.0
    %702 = vmatprep.subr.mxu0 0.0
    %703 = vmatpush1.msra.mxu0 0.0
    %704 = vmatprep.subr.mxu0 0.0
    %705 = vmatpush1.msra.mxu0 0.0
    %706 = vmatprep.subr.mxu0 0.0
    %707 = vmatpush1.msra.mxu0 0.0
    %708 = vmatprep.subr.mxu0 0.0
    %709 = vmatpush1.msra.mxu0 0.0
    %710 = vmatprep.mubr.f32.mxu0 0.0
    %711 = vmatmul.mubr.f32.gmra.mrb[0].mxu0 %v642
    %v712 = vpop.f32.mrb[0].mxu0
    %v713 = vadd.f32 0.0, %v712
    %v714 = vpop.f32.mrb[0].mxu0
    %v715 = vadd.f32 0.0, %v714
    %716 = vdwg.mxu0
    %717 = vmatprep.subr.mxu0 0.0
    %718 = vmatpush1.msra.mxu0 %v428
    %719 = vmatprep.subr.mxu0 0.0
    %720 = vmatpush1.msra.mxu0 %v431
    %721 = vmatprep.subr.mxu0 0.0
    %722 = vmatpush1.msra.mxu0 %v434
    %723 = vmatprep.subr.mxu0 0.0
    %724 = vmatpush1.msra.mxu0 %v437
    %725 = vmatprep.subr.mxu0 0.0
    %726 = vmatpush1.msra.mxu0 %v440
    %727 = vmatprep.subr.mxu0 0.0
    %728 = vmatpush1.msra.mxu0 %v443
    %729 = vmatprep.subr.mxu0 0.0
    %730 = vmatpush1.msra.mxu0 %v446
    %731 = vmatprep.subr.mxu0 0.0
    %732 = vmatpush1.msra.mxu0 %v449
    %733 = vmatprep.subr.mxu0 0.0
    %734 = vmatpush1.msra.mxu0 %v452
    %735 = vmatprep.subr.mxu0 0.0
    %736 = vmatpush1.msra.mxu0 %v455
    %737 = vmatprep.subr.mxu0 0.0
    %738 = vmatpush1.msra.mxu0 %v458
    %739 = vmatprep.subr.mxu0 0.0
    %740 = vmatpush1.msra.mxu0 %v461
    %741 = vmatprep.subr.mxu0 0.0
    %742 = vmatpush1.msra.mxu0 %v464
    %743 = vmatprep.subr.mxu0 0.0
    %744 = vmatpush1.msra.mxu0 %v467
    %745 = vmatprep.subr.mxu0 0.0
    %746 = vmatpush1.msra.mxu0 %v470
    %747 = vmatprep.subr.mxu0 0.0
    %748 = vmatpush1.msra.mxu0 %v473
    %749 = vmatprep.subr.mxu0 0.0
    %750 = vmatpush1.msra.mxu0 0.0
    %751 = vmatprep.subr.mxu0 0.0
    %752 = vmatpush1.msra.mxu0 0.0
    %753 = vmatprep.subr.mxu0 0.0
    %754 = vmatpush1.msra.mxu0 0.0
    %755 = vmatprep.subr.mxu0 0.0
    %756 = vmatpush1.msra.mxu0 0.0
    %757 = vmatprep.subr.mxu0 0.0
    %758 = vmatpush1.msra.mxu0 0.0
    %759 = vmatprep.subr.mxu0 0.0
    %760 = vmatpush1.msra.mxu0 0.0
    %761 = vmatprep.subr.mxu0 0.0
    %762 = vmatpush1.msra.mxu0 0.0
    %763 = vmatprep.subr.mxu0 0.0
    %764 = vmatpush1.msra.mxu0 0.0
    %765 = vmatprep.subr.mxu0 0.0
    %766 = vmatpush1.msra.mxu0 0.0
    %767 = vmatprep.subr.mxu0 0.0
    %768 = vmatpush1.msra.mxu0 0.0
    %769 = vmatprep.subr.mxu0 0.0
    %770 = vmatpush1.msra.mxu0 0.0
    %771 = vmatprep.subr.mxu0 0.0
    %772 = vmatpush1.msra.mxu0 0.0
    %773 = vmatprep.subr.mxu0 0.0
    %774 = vmatpush1.msra.mxu0 0.0
    %775 = vmatprep.subr.mxu0 0.0
    %776 = vmatpush1.msra.mxu0 0.0
    %777 = vmatprep.subr.mxu0 0.0
    %778 = vmatpush1.msra.mxu0 0.0
    %779 = vmatprep.subr.mxu0 0.0
    %780 = vmatpush1.msra.mxu0 0.0
    %781 = vmatprep.mubr.f32.mxu0 0.0
    %782 = vmatmul.mubr.f32.gmra.mrb[0].mxu0 %v642
    %v783 = vpop.f32.mrb[0].mxu0
    %v784 = vadd.f32 0.0, %v783
    %v785 = vpop.f32.mrb[0].mxu0
    %786 = vdwg.mxu0
    %v787 = vadd.f32 %v643, %v713
    %v788 = vmul.f32 %v787, 0.5
    %v789 = vtanh.pop %v788
    %v790 = vadd.f32 %v789, 1.0
    %v791 = vmul.f32 %v790, 0.5
    %v792 = vadd.f32 %v644, %v715
    %v793 = vmul.f32 %v792, 0.5
    %v794 = vtanh.pop %v793
    %v795 = vadd.f32 %v794, 1.0
    %v796 = vmul.f32 %v795, 0.5
    %v797 = vadd.f32 %v784, %v633
    %v798 = vmul.f32 %v791, %v797
    %v799 = vadd.f32 %v645, %v798
    %v800 = vtanh.pop %v799
    %v801 = vsub.f32 1.0, %v796
    %v802 = vmul.f32 %v801, %v800
    %v803 = vmul.f32 %v796, %v642
    %v804 = vadd.f32 %v802, %v803
    %v805 = vld [vmem:[#allocation2 + $0x30] sm:$0xff]
    %v806 = vld [vmem:[#allocation2 + $0x38] sm:$0xff]
    %v807 = vld [vmem:[#allocation2 + $0x40] sm:$0xff]
    %808 = vmatprep.subr.mxu0 %v427
    %809 = vmatpush1.msra.mxu0 %v426
    %810 = vmatprep.subr.mxu0 %v430
    %811 = vmatpush1.msra.mxu0 %v429
    %812 = vmatprep.subr.mxu0 %v433
    %813 = vmatpush1.msra.mxu0 %v432
    %814 = vmatprep.subr.mxu0 %v436
    %815 = vmatpush1.msra.mxu0 %v435
    %816 = vmatprep.subr.mxu0 %v439
    %817 = vmatpush1.msra.mxu0 %v438
    %818 = vmatprep.subr.mxu0 %v442
    %819 = vmatpush1.msra.mxu0 %v441
    %820 = vmatprep.subr.mxu0 %v445
    %821 = vmatpush1.msra.mxu0 %v444
    %822 = vmatprep.subr.mxu0 %v448
    %823 = vmatpush1.msra.mxu0 %v447
    %824 = vmatprep.subr.mxu0 %v451
    %825 = vmatpush1.msra.mxu0 %v450
    %826 = vmatprep.subr.mxu0 %v454
    %827 = vmatpush1.msra.mxu0 %v453
    %828 = vmatprep.subr.mxu0 %v457
    %829 = vmatpush1.msra.mxu0 %v456
    %830 = vmatprep.subr.mxu0 %v460
    %831 = vmatpush1.msra.mxu0 %v459
    %832 = vmatprep.subr.mxu0 %v463
    %833 = vmatpush1.msra.mxu0 %v462
    %834 = vmatprep.subr.mxu0 %v466
    %835 = vmatpush1.msra.mxu0 %v465
    %836 = vmatprep.subr.mxu0 %v469
    %837 = vmatpush1.msra.mxu0 %v468
    %838 = vmatprep.subr.mxu0 %v472
    %839 = vmatpush1.msra.mxu0 %v471
    %840 = vmatprep.subr.mxu0 0.0
    %841 = vmatpush1.msra.mxu0 0.0
    %842 = vmatprep.subr.mxu0 0.0
    %843 = vmatpush1.msra.mxu0 0.0
    %844 = vmatprep.subr.mxu0 0.0
    %845 = vmatpush1.msra.mxu0 0.0
    %846 = vmatprep.subr.mxu0 0.0
    %847 = vmatpush1.msra.mxu0 0.0
    %848 = vmatprep.subr.mxu0 0.0
    %849 = vmatpush1.msra.mxu0 0.0
    %850 = vmatprep.subr.mxu0 0.0
    %851 = vmatpush1.msra.mxu0 0.0
    %852 = vmatprep.subr.mxu0 0.0
    %853 = vmatpush1.msra.mxu0 0.0
    %854 = vmatprep.subr.mxu0 0.0
    %855 = vmatpush1.msra.mxu0 0.0
    %856 = vmatprep.subr.mxu0 0.0
    %857 = vmatpush1.msra.mxu0 0.0
    %858 = vmatprep.subr.mxu0 0.0
    %859 = vmatpush1.msra.mxu0 0.0
    %860 = vmatprep.subr.mxu0 0.0
    %861 = vmatpush1.msra.mxu0 0.0
    %862 = vmatprep.subr.mxu0 0.0
    %863 = vmatpush1.msra.mxu0 0.0
    %864 = vmatprep.subr.mxu0 0.0
    %865 = vmatpush1.msra.mxu0 0.0
    %866 = vmatprep.subr.mxu0 0.0
    %867 = vmatpush1.msra.mxu0 0.0
    %868 = vmatprep.subr.mxu0 0.0
    %869 = vmatpush1.msra.mxu0 0.0
    %870 = vmatprep.subr.mxu0 0.0
    %871 = vmatpush1.msra.mxu0 0.0
    %872 = vmatprep.mubr.f32.mxu0 0.0
    %873 = vmatmul.mubr.f32.gmra.mrb[0].mxu0 %v804
    %v874 = vpop.f32.mrb[0].mxu0
    %v875 = vadd.f32 0.0, %v874
    %v876 = vpop.f32.mrb[0].mxu0
    %v877 = vadd.f32 0.0, %v876
    %878 = vdwg.mxu0
    %879 = vmatprep.subr.mxu0 0.0
    %880 = vmatpush1.msra.mxu0 %v428
    %881 = vmatprep.subr.mxu0 0.0
    %882 = vmatpush1.msra.mxu0 %v431
    %883 = vmatprep.subr.mxu0 0.0
    %884 = vmatpush1.msra.mxu0 %v434
    %885 = vmatprep.subr.mxu0 0.0
    %886 = vmatpush1.msra.mxu0 %v437
    %887 = vmatprep.subr.mxu0 0.0
    %888 = vmatpush1.msra.mxu0 %v440
    %889 = vmatprep.subr.mxu0 0.0
    %890 = vmatpush1.msra.mxu0 %v443
    %891 = vmatprep.subr.mxu0 0.0
    %892 = vmatpush1.msra.mxu0 %v446
    %893 = vmatprep.subr.mxu0 0.0
    %894 = vmatpush1.msra.mxu0 %v449
    %895 = vmatprep.subr.mxu0 0.0
    %896 = vmatpush1.msra.mxu0 %v452
    %897 = vmatprep.subr.mxu0 0.0
    %898 = vmatpush1.msra.mxu0 %v455
    %899 = vmatprep.subr.mxu0 0.0
    %900 = vmatpush1.msra.mxu0 %v458
    %901 = vmatprep.subr.mxu0 0.0
    %902 = vmatpush1.msra.mxu0 %v461
    %903 = vmatprep.subr.mxu0 0.0
    %904 = vmatpush1.msra.mxu0 %v464
    %905 = vmatprep.subr.mxu0 0.0
    %906 = vmatpush1.msra.mxu0 %v467
    %907 = vmatprep.subr.mxu0 0.0
    %908 = vmatpush1.msra.mxu0 %v470
    %909 = vmatprep.subr.mxu0 0.0
    %910 = vmatpush1.msra.mxu0 %v473
    %911 = vmatprep.subr.mxu0 0.0
    %912 = vmatpush1.msra.mxu0 0.0
    %913 = vmatprep.subr.mxu0 0.0
    %914 = vmatpush1.msra.mxu0 0.0
    %915 = vmatprep.subr.mxu0 0.0
    %916 = vmatpush1.msra.mxu0 0.0
    %917 = vmatprep.subr.mxu0 0.0
    %918 = vmatpush1.msra.mxu0 0.0
    %919 = vmatprep.subr.mxu0 0.0
    %920 = vmatpush1.msra.mxu0 0.0
    %921 = vmatprep.subr.mxu0 0.0
    %922 = vmatpush1.msra.mxu0 0.0
    %923 = vmatprep.subr.mxu0 0.0
    %924 = vmatpush1.msra.mxu0 0.0
    %925 = vmatprep.subr.mxu0 0.0
    %926 = vmatpush1.msra.mxu0 0.0
    %927 = vmatprep.subr.mxu0 0.0
    %928 = vmatpush1.msra.mxu0 0.0
    %929 = vmatprep.subr.mxu0 0.0
    %930 = vmatpush1.msra.mxu0 0.0
    %931 = vmatprep.subr.mxu0 0.0
    %932 = vmatpush1.msra.mxu0 0.0
    %933 = vmatprep.subr.mxu0 0.0
    %934 = vmatpush1.msra.mxu0 0.0
    %935 = vmatprep.subr.mxu0 0.0
    %936 = vmatpush1.msra.mxu0 0.0
    %937 = vmatprep.subr.mxu0 0.0
    %938 = vmatpush1.msra.mxu0 0.0
    %939 = vmatprep.subr.mxu0 0.0
    %940 = vmatpush1.msra.mxu0 0.0
    %941 = vmatprep.subr.mxu0 0.0
    %942 = vmatpush1.msra.mxu0 0.0
    %943 = vmatprep.mubr.f32.mxu0 0.0
    %944 = vmatmul.mubr.f32.gmra.mrb[0].mxu0 %v804
    %v945 = vpop.f32.mrb[0].mxu0
    %v946 = vadd.f32 0.0, %v945
    %v947 = vpop.f32.mrb[0].mxu0
    %948 = vdwg.mxu0
    %v949 = vadd.f32 %v805, %v875
    %v950 = vmul.f32 %v949, 0.5
    %v951 = vtanh.pop %v950
    %v952 = vadd.f32 %v951, 1.0
    %v953 = vmul.f32 %v952, 0.5
    %v954 = vadd.f32 %v806, %v877
    %v955 = vmul.f32 %v954, 0.5
    %v956 = vtanh.pop %v955
    %v957 = vadd.f32 %v956, 1.0
    %v958 = vmul.f32 %v957, 0.5
    %v959 = vadd.f32 %v946, %v633
    %v960 = vmul.f32 %v953, %v959
    %v961 = vadd.f32 %v807, %v960
    %v962 = vtanh.pop %v961
    %v963 = vsub.f32 1.0, %v958
    %v964 = vmul.f32 %v963, %v962
    %v965 = vmul.f32 %v958, %v804
    %v966 = vadd.f32 %v964, %v965
    %v967 = vld [vmem:[#allocation2 + $0x48] sm:$0xff]
    %v968 = vld [vmem:[#allocation2 + $0x50] sm:$0xff]
    %v969 = vld [vmem:[#allocation2 + $0x58] sm:$0xff]
    %970 = vmatprep.subr.mxu0 %v427
    %971 = vmatpush1.msra.mxu0 %v426
    %972 = vmatprep.subr.mxu0 %v430
    %973 = vmatpush1.msra.mxu0 %v429
    %974 = vmatprep.subr.mxu0 %v433
    %975 = vmatpush1.msra.mxu0 %v432
    %976 = vmatprep.subr.mxu0 %v436
    %977 = vmatpush1.msra.mxu0 %v435
    %978 = vmatprep.subr.mxu0 %v439
    %979 = vmatpush1.msra.mxu0 %v438
    %980 = vmatprep.subr.mxu0 %v442
    %981 = vmatpush1.msra.mxu0 %v441
    %982 = vmatprep.subr.mxu0 %v445
    %983 = vmatpush1.msra.mxu0 %v444
    %984 = vmatprep.subr.mxu0 %v448
    %985 = vmatpush1.msra.mxu0 %v447
    %986 = vmatprep.subr.mxu0 %v451
    %987 = vmatpush1.msra.mxu0 %v450
    %988 = vmatprep.subr.mxu0 %v454
    %989 = vmatpush1.msra.mxu0 %v453
    %990 = vmatprep.subr.mxu0 %v457
    %991 = vmatpush1.msra.mxu0 %v456
    %992 = vmatprep.subr.mxu0 %v460
    %993 = vmatpush1.msra.mxu0 %v459
    %994 = vmatprep.subr.mxu0 %v463
    %995 = vmatpush1.msra.mxu0 %v462
    %996 = vmatprep.subr.mxu0 %v466
    %997 = vmatpush1.msra.mxu0 %v465
    %998 = vmatprep.subr.mxu0 %v469
    %999 = vmatpush1.msra.mxu0 %v468
    %1000 = vmatprep.subr.mxu0 %v472
    %1001 = vmatpush1.msra.mxu0 %v471
    %1002 = vmatprep.subr.mxu0 0.0
    %1003 = vmatpush1.msra.mxu0 0.0
    %1004 = vmatprep.subr.mxu0 0.0
    %1005 = vmatpush1.msra.mxu0 0.0
    %1006 = vmatprep.subr.mxu0 0.0
    %1007 = vmatpush1.msra.mxu0 0.0
    %1008 = vmatprep.subr.mxu0 0.0
    %1009 = vmatpush1.msra.mxu0 0.0
    %1010 = vmatprep.subr.mxu0 0.0
    %1011 = vmatpush1.msra.mxu0 0.0
    %1012 = vmatprep.subr.mxu0 0.0
    %1013 = vmatpush1.msra.mxu0 0.0
    %1014 = vmatprep.subr.mxu0 0.0
    %1015 = vmatpush1.msra.mxu0 0.0
    %1016 = vmatprep.subr.mxu0 0.0
    %1017 = vmatpush1.msra.mxu0 0.0
    %1018 = vmatprep.subr.mxu0 0.0
    %1019 = vmatpush1.msra.mxu0 0.0
    %1020 = vmatprep.subr.mxu0 0.0
    %1021 = vmatpush1.msra.mxu0 0.0
    %1022 = vmatprep.subr.mxu0 0.0
    %1023 = vmatpush1.msra.mxu0 0.0
    %1024 = vmatprep.subr.mxu0 0.0
    %1025 = vmatpush1.msra.mxu0 0.0
    %1026 = vmatprep.subr.mxu0 0.0
    %1027 = vmatpush1.msra.mxu0 0.0
    %1028 = vmatprep.subr.mxu0 0.0
    %1029 = vmatpush1.msra.mxu0 0.0
    %1030 = vmatprep.subr.mxu0 0.0
    %1031 = vmatpush1.msra.mxu0 0.0
    %1032 = vmatprep.subr.mxu0 0.0
    %1033 = vmatpush1.msra.mxu0 0.0
    %1034 = vmatprep.mubr.f32.mxu0 0.0
    %1035 = vmatmul.mubr.f32.gmra.mrb[0].mxu0 %v966
    %v1036 = vpop.f32.mrb[0].mxu0
    %v1037 = vadd.f32 0.0, %v1036
    %v1038 = vpop.f32.mrb[0].mxu0
    %v1039 = vadd.f32 0.0, %v1038
    %1040 = vdwg.mxu0
    %1041 = vmatprep.subr.mxu0 0.0
    %1042 = vmatpush1.msra.mxu0 %v428
    %1043 = vmatprep.subr.mxu0 0.0
    %1044 = vmatpush1.msra.mxu0 %v431
    %1045 = vmatprep.subr.mxu0 0.0
    %1046 = vmatpush1.msra.mxu0 %v434
    %1047 = vmatprep.subr.mxu0 0.0
    %1048 = vmatpush1.msra.mxu0 %v437
    %1049 = vmatprep.subr.mxu0 0.0
    %1050 = vmatpush1.msra.mxu0 %v440
    %1051 = vmatprep.subr.mxu0 0.0
    %1052 = vmatpush1.msra.mxu0 %v443
    %1053 = vmatprep.subr.mxu0 0.0
    %1054 = vmatpush1.msra.mxu0 %v446
    %1055 = vmatprep.subr.mxu0 0.0
    %1056 = vmatpush1.msra.mxu0 %v449
    %1057 = vmatprep.subr.mxu0 0.0
    %1058 = vmatpush1.msra.mxu0 %v452
    %1059 = vmatprep.subr.mxu0 0.0
    %1060 = vmatpush1.msra.mxu0 %v455
    %1061 = vmatprep.subr.mxu0 0.0
    %1062 = vmatpush1.msra.mxu0 %v458
    %1063 = vmatprep.subr.mxu0 0.0
    %1064 = vmatpush1.msra.mxu0 %v461
    %1065 = vmatprep.subr.mxu0 0.0
    %1066 = vmatpush1.msra.mxu0 %v464
    %1067 = vmatprep.subr.mxu0 0.0
    %1068 = vmatpush1.msra.mxu0 %v467
    %1069 = vmatprep.subr.mxu0 0.0
    %1070 = vmatpush1.msra.mxu0 %v470
    %1071 = vmatprep.subr.mxu0 0.0
    %1072 = vmatpush1.msra.mxu0 %v473
    %1073 = vmatprep.subr.mxu0 0.0
    %1074 = vmatpush1.msra.mxu0 0.0
    %1075 = vmatprep.subr.mxu0 0.0
    %1076 = vmatpush1.msra.mxu0 0.0
    %1077 = vmatprep.subr.mxu0 0.0
    %1078 = vmatpush1.msra.mxu0 0.0
    %1079 = vmatprep.subr.mxu0 0.0
    %1080 = vmatpush1.msra.mxu0 0.0
    %1081 = vmatprep.subr.mxu0 0.0
    %1082 = vmatpush1.msra.mxu0 0.0
    %1083 = vmatprep.subr.mxu0 0.0
    %1084 = vmatpush1.msra.mxu0 0.0
    %1085 = vmatprep.subr.mxu0 0.0
    %1086 = vmatpush1.msra.mxu0 0.0
    %1087 = vmatprep.subr.mxu0 0.0
    %1088 = vmatpush1.msra.mxu0 0.0
    %1089 = vmatprep.subr.mxu0 0.0
    %1090 = vmatpush1.msra.mxu0 0.0
    %1091 = vmatprep.subr.mxu0 0.0
    %1092 = vmatpush1.msra.mxu0 0.0
    %1093 = vmatprep.subr.mxu0 0.0
    %1094 = vmatpush1.msra.mxu0 0.0
    %1095 = vmatprep.subr.mxu0 0.0
    %1096 = vmatpush1.msra.mxu0 0.0
    %1097 = vmatprep.subr.mxu0 0.0
    %1098 = vmatpush1.msra.mxu0 0.0
    %1099 = vmatprep.subr.mxu0 0.0
    %1100 = vmatpush1.msra.mxu0 0.0
    %1101 = vmatprep.subr.mxu0 0.0
    %1102 = vmatpush1.msra.mxu0 0.0
    %1103 = vmatprep.subr.mxu0 0.0
    %1104 = vmatpush1.msra.mxu0 0.0
    %1105 = vmatprep.mubr.f32.mxu0 0.0
    %1106 = vmatmul.mubr.f32.gmra.mrb[0].mxu0 %v966
    %v1107 = vpop.f32.mrb[0].mxu0
    %v1108 = vadd.f32 0.0, %v1107
    %v1109 = vpop.f32.mrb[0].mxu0
    %1110 = vdwg.mxu0
    %v1111 = vadd.f32 %v967, %v1037
    %v1112 = vmul.f32 %v1111, 0.5
    %v1113 = vtanh.pop %v1112
    %v1114 = vadd.f32 %v1113, 1.0
    %v1115 = vmul.f32 %v1114, 0.5
    %v1116 = vadd.f32 %v968, %v1039
    %v1117 = vmul.f32 %v1116, 0.5
    %v1118 = vtanh.pop %v1117
    %v1119 = vadd.f32 %v1118, 1.0
    %v1120 = vmul.f32 %v1119, 0.5
    %v1121 = vadd.f32 %v1108, %v633
    %v1122 = vmul.f32 %v1115, %v1121
    %v1123 = vadd.f32 %v969, %v1122
    %v1124 = vtanh.pop %v1123
    %v1125 = vsub.f32 1.0, %v1120
    %v1126 = vmul.f32 %v1125, %v1124
    %v1127 = vmul.f32 %v1120, %v966
    %v1128 = vadd.f32 %v1126, %v1127
    %v1129 = vld [vmem:[#allocation2 + $0x60] sm:$0xff]
    %v1130 = vld [vmem:[#allocation2 + $0x68] sm:$0xff]
    %v1131 = vld [vmem:[#allocation2 + $0x70] sm:$0xff]
    %1132 = vmatprep.subr.mxu0 %v427
    %1133 = vmatpush1.msra.mxu0 %v426
    %1134 = vmatprep.subr.mxu0 %v430
    %1135 = vmatpush1.msra.mxu0 %v429
    %1136 = vmatprep.subr.mxu0 %v433
    %1137 = vmatpush1.msra.mxu0 %v432
    %1138 = vmatprep.subr.mxu0 %v436
    %1139 = vmatpush1.msra.mxu0 %v435
    %1140 = vmatprep.subr.mxu0 %v439
    %1141 = vmatpush1.msra.mxu0 %v438
    %1142 = vmatprep.subr.mxu0 %v442
    %1143 = vmatpush1.msra.mxu0 %v441
    %1144 = vmatprep.subr.mxu0 %v445
    %1145 = vmatpush1.msra.mxu0 %v444
    %1146 = vmatprep.subr.mxu0 %v448
    %1147 = vmatpush1.msra.mxu0 %v447
    %1148 = vmatprep.subr.mxu0 %v451
    %1149 = vmatpush1.msra.mxu0 %v450
    %1150 = vmatprep.subr.mxu0 %v454
    %1151 = vmatpush1.msra.mxu0 %v453
    %1152 = vmatprep.subr.mxu0 %v457
    %1153 = vmatpush1.msra.mxu0 %v456
    %1154 = vmatprep.subr.mxu0 %v460
    %1155 = vmatpush1.msra.mxu0 %v459
    %1156 = vmatprep.subr.mxu0 %v463
    %1157 = vmatpush1.msra.mxu0 %v462
    %1158 = vmatprep.subr.mxu0 %v466
    %1159 = vmatpush1.msra.mxu0 %v465
    %1160 = vmatprep.subr.mxu0 %v469
    %1161 = vmatpush1.msra.mxu0 %v468
    %1162 = vmatprep.subr.mxu0 %v472
    %1163 = vmatpush1.msra.mxu0 %v471
    %1164 = vmatprep.subr.mxu0 0.0
    %1165 = vmatpush1.msra.mxu0 0.0
    %1166 = vmatprep.subr.mxu0 0.0
    %1167 = vmatpush1.msra.mxu0 0.0
    %1168 = vmatprep.subr.mxu0 0.0
    %1169 = vmatpush1.msra.mxu0 0.0
    %1170 = vmatprep.subr.mxu0 0.0
    %1171 = vmatpush1.msra.mxu0 0.0
    %1172 = vmatprep.subr.mxu0 0.0
    %1173 = vmatpush1.msra.mxu0 0.0
    %1174 = vmatprep.subr.mxu0 0.0
    %1175 = vmatpush1.msra.mxu0 0.0
    %1176 = vmatprep.subr.mxu0 0.0
    %1177 = vmatpush1.msra.mxu0 0.0
    %1178 = vmatprep.subr.mxu0 0.0
    %1179 = vmatpush1.msra.mxu0 0.0
    %1180 = vmatprep.subr.mxu0 0.0
    %1181 = vmatpush1.msra.mxu0 0.0
    %1182 = vmatprep.subr.mxu0 0.0
    %1183 = vmatpush1.msra.mxu0 0.0
    %1184 = vmatprep.subr.mxu0 0.0
    %1185 = vmatpush1.msra.mxu0 0.0
    %1186 = vmatprep.subr.mxu0 0.0
    %1187 = vmatpush1.msra.mxu0 0.0
    %1188 = vmatprep.subr.mxu0 0.0
    %1189 = vmatpush1.msra.mxu0 0.0
    %1190 = vmatprep.subr.mxu0 0.0
    %1191 = vmatpush1.msra.mxu0 0.0
    %1192 = vmatprep.subr.mxu0 0.0
    %1193 = vmatpush1.msra.mxu0 0.0
    %1194 = vmatprep.subr.mxu0 0.0
    %1195 = vmatpush1.msra.mxu0 0.0
    %1196 = vmatprep.mubr.f32.mxu0 0.0
    %1197 = vmatmul.mubr.f32.gmra.mrb[0].mxu0 %v1128
    %v1198 = vpop.f32.mrb[0].mxu0
    %v1199 = vadd.f32 0.0, %v1198
    %v1200 = vpop.f32.mrb[0].mxu0
    %v1201 = vadd.f32 0.0, %v1200
    %1202 = vdwg.mxu0
    %1203 = vmatprep.subr.mxu0 0.0
    %1204 = vmatpush1.msra.mxu0 %v428
    %1205 = vmatprep.subr.mxu0 0.0
    %1206 = vmatpush1.msra.mxu0 %v431
    %1207 = vmatprep.subr.mxu0 0.0
    %1208 = vmatpush1.msra.mxu0 %v434
    %1209 = vmatprep.subr.mxu0 0.0
    %1210 = vmatpush1.msra.mxu0 %v437
    %1211 = vmatprep.subr.mxu0 0.0
    %1212 = vmatpush1.msra.mxu0 %v440
    %1213 = vmatprep.subr.mxu0 0.0
    %1214 = vmatpush1.msra.mxu0 %v443
    %1215 = vmatprep.subr.mxu0 0.0
    %1216 = vmatpush1.msra.mxu0 %v446
    %1217 = vmatprep.subr.mxu0 0.0
    %1218 = vmatpush1.msra.mxu0 %v449
    %1219 = vmatprep.subr.mxu0 0.0
    %1220 = vmatpush1.msra.mxu0 %v452
    %1221 = vmatprep.subr.mxu0 0.0
    %1222 = vmatpush1.msra.mxu0 %v455
    %1223 = vmatprep.subr.mxu0 0.0
    %1224 = vmatpush1.msra.mxu0 %v458
    %1225 = vmatprep.subr.mxu0 0.0
    %1226 = vmatpush1.msra.mxu0 %v461
    %1227 = vmatprep.subr.mxu0 0.0
    %1228 = vmatpush1.msra.mxu0 %v464
    %1229 = vmatprep.subr.mxu0 0.0
    %1230 = vmatpush1.msra.mxu0 %v467
    %1231 = vmatprep.subr.mxu0 0.0
    %1232 = vmatpush1.msra.mxu0 %v470
    %1233 = vmatprep.subr.mxu0 0.0
    %1234 = vmatpush1.msra.mxu0 %v473
    %1235 = vmatprep.subr.mxu0 0.0
    %1236 = vmatpush1.msra.mxu0 0.0
    %1237 = vmatprep.subr.mxu0 0.0
    %1238 = vmatpush1.msra.mxu0 0.0
    %1239 = vmatprep.subr.mxu0 0.0
    %1240 = vmatpush1.msra.mxu0 0.0
    %1241 = vmatprep.subr.mxu0 0.0
    %1242 = vmatpush1.msra.mxu0 0.0
    %1243 = vmatprep.subr.mxu0 0.0
    %1244 = vmatpush1.msra.mxu0 0.0
    %1245 = vmatprep.subr.mxu0 0.0
    %1246 = vmatpush1.msra.mxu0 0.0
    %1247 = vmatprep.subr.mxu0 0.0
    %1248 = vmatpush1.msra.mxu0 0.0
    %1249 = vmatprep.subr.mxu0 0.0
    %1250 = vmatpush1.msra.mxu0 0.0
    %1251 = vmatprep.subr.mxu0 0.0
    %1252 = vmatpush1.msra.mxu0 0.0
    %1253 = vmatprep.subr.mxu0 0.0
    %1254 = vmatpush1.msra.mxu0 0.0
    %1255 = vmatprep.subr.mxu0 0.0
    %1256 = vmatpush1.msra.mxu0 0.0
    %1257 = vmatprep.subr.mxu0 0.0
    %1258 = vmatpush1.msra.mxu0 0.0
    %1259 = vmatprep.subr.mxu0 0.0
    %1260 = vmatpush1.msra.mxu0 0.0
    %1261 = vmatprep.subr.mxu0 0.0
    %1262 = vmatpush1.msra.mxu0 0.0
    %1263 = vmatprep.subr.mxu0 0.0
    %1264 = vmatpush1.msra.mxu0 0.0
    %1265 = vmatprep.subr.mxu0 0.0
    %1266 = vmatpush1.msra.mxu0 0.0
    %1267 = vmatprep.mubr.f32.mxu0 0.0
    %1268 = vmatmul.mubr.f32.gmra.mrb[0].mxu0 %v1128
    %v1269 = vpop.f32.mrb[0].mxu0
    %v1270 = vadd.f32 0.0, %v1269
    %v1271 = vpop.f32.mrb[0].mxu0
    %1272 = vdwg.mxu0
    %v1273 = vadd.f32 %v1129, %v1199
    %v1274 = vmul.f32 %v1273, 0.5
    %v1275 = vtanh.pop %v1274
    %v1276 = vadd.f32 %v1275, 1.0
    %v1277 = vmul.f32 %v1276, 0.5
    %v1278 = vadd.f32 %v1130, %v1201
    %v1279 = vmul.f32 %v1278, 0.5
    %v1280 = vtanh.pop %v1279
    %v1281 = vadd.f32 %v1280, 1.0
    %v1282 = vmul.f32 %v1281, 0.5
    %v1283 = vadd.f32 %v1270, %v633
    %v1284 = vmul.f32 %v1277, %v1283
    %v1285 = vadd.f32 %v1131, %v1284
    %v1286 = vtanh.pop %v1285
    %v1287 = vsub.f32 1.0, %v1282
    %v1288 = vmul.f32 %v1287, %v1286
    %v1289 = vmul.f32 %v1282, %v1128
    %v1290 = vadd.f32 %v1288, %v1289
    %v1291 = vld [vmem:[#allocation2 + $0x78] sm:$0xff]
    %v1292 = vld [vmem:[#allocation2 + $0x80] sm:$0xff]
    %v1293 = vld [vmem:[#allocation2 + $0x88] sm:$0xff]
    %1294 = vmatprep.subr.mxu0 %v427
    %1295 = vmatpush1.msra.mxu0 %v426
    %1296 = vmatprep.subr.mxu0 %v430
    %1297 = vmatpush1.msra.mxu0 %v429
    %1298 = vmatprep.subr.mxu0 %v433
    %1299 = vmatpush1.msra.mxu0 %v432
    %1300 = vmatprep.subr.mxu0 %v436
    %1301 = vmatpush1.msra.mxu0 %v435
    %1302 = vmatprep.subr.mxu0 %v439
    %1303 = vmatpush1.msra.mxu0 %v438
    %1304 = vmatprep.subr.mxu0 %v442
    %1305 = vmatpush1.msra.mxu0 %v441
    %1306 = vmatprep.subr.mxu0 %v445
    %1307 = vmatpush1.msra.mxu0 %v444
    %1308 = vmatprep.subr.mxu0 %v448
    %1309 = vmatpush1.msra.mxu0 %v447
    %1310 = vmatprep.subr.mxu0 %v451
    %1311 = vmatpush1.msra.mxu0 %v450
    %1312 = vmatprep.subr.mxu0 %v454
    %1313 = vmatpush1.msra.mxu0 %v453
    %1314 = vmatprep.subr.mxu0 %v457
    %1315 = vmatpush1.msra.mxu0 %v456
    %1316 = vmatprep.subr.mxu0 %v460
    %1317 = vmatpush1.msra.mxu0 %v459
    %1318 = vmatprep.subr.mxu0 %v463
    %1319 = vmatpush1.msra.mxu0 %v462
    %1320 = vmatprep.subr.mxu0 %v466
    %1321 = vmatpush1.msra.mxu0 %v465
    %1322 = vmatprep.subr.mxu0 %v469
    %1323 = vmatpush1.msra.mxu0 %v468
    %1324 = vmatprep.subr.mxu0 %v472
    %1325 = vmatpush1.msra.mxu0 %v471
    %1326 = vmatprep.subr.mxu0 0.0
    %1327 = vmatpush1.msra.mxu0 0.0
    %1328 = vmatprep.subr.mxu0 0.0
    %1329 = vmatpush1.msra.mxu0 0.0
    %1330 = vmatprep.subr.mxu0 0.0
    %1331 = vmatpush1.msra.mxu0 0.0
    %1332 = vmatprep.subr.mxu0 0.0
    %1333 = vmatpush1.msra.mxu0 0.0
    %1334 = vmatprep.subr.mxu0 0.0
    %1335 = vmatpush1.msra.mxu0 0.0
    %1336 = vmatprep.subr.mxu0 0.0
    %1337 = vmatpush1.msra.mxu0 0.0
    %1338 = vmatprep.subr.mxu0 0.0
    %1339 = vmatpush1.msra.mxu0 0.0
    %1340 = vmatprep.subr.mxu0 0.0
    %1341 = vmatpush1.msra.mxu0 0.0
    %1342 = vmatprep.subr.mxu0 0.0
    %1343 = vmatpush1.msra.mxu0 0.0
    %1344 = vmatprep.subr.mxu0 0.0
    %1345 = vmatpush1.msra.mxu0 0.0
    %1346 = vmatprep.subr.mxu0 0.0
    %1347 = vmatpush1.msra.mxu0 0.0
    %1348 = vmatprep.subr.mxu0 0.0
    %1349 = vmatpush1.msra.mxu0 0.0
    %1350 = vmatprep.subr.mxu0 0.0
    %1351 = vmatpush1.msra.mxu0 0.0
    %1352 = vmatprep.subr.mxu0 0.0
    %1353 = vmatpush1.msra.mxu0 0.0
    %1354 = vmatprep.subr.mxu0 0.0
    %1355 = vmatpush1.msra.mxu0 0.0
    %1356 = vmatprep.subr.mxu0 0.0
    %1357 = vmatpush1.msra.mxu0 0.0
    %1358 = vmatprep.mubr.f32.mxu0 0.0
    %1359 = vmatmul.mubr.f32.gmra.mrb[0].mxu0 %v1290
    %v1360 = vpop.f32.mrb[0].mxu0
    %v1361 = vadd.f32 0.0, %v1360
    %v1362 = vpop.f32.mrb[0].mxu0
    %v1363 = vadd.f32 0.0, %v1362
    %1364 = vdwg.mxu0
    %1365 = vmatprep.subr.mxu0 0.0
    %1366 = vmatpush1.msra.mxu0 %v428
    %1367 = vmatprep.subr.mxu0 0.0
    %1368 = vmatpush1.msra.mxu0 %v431
    %1369 = vmatprep.subr.mxu0 0.0
    %1370 = vmatpush1.msra.mxu0 %v434
    %1371 = vmatprep.subr.mxu0 0.0
    %1372 = vmatpush1.msra.mxu0 %v437
    %1373 = vmatprep.subr.mxu0 0.0
    %1374 = vmatpush1.msra.mxu0 %v440
    %1375 = vmatprep.subr.mxu0 0.0
    %1376 = vmatpush1.msra.mxu0 %v443
    %1377 = vmatprep.subr.mxu0 0.0
    %1378 = vmatpush1.msra.mxu0 %v446
    %1379 = vmatprep.subr.mxu0 0.0
    %1380 = vmatpush1.msra.mxu0 %v449
    %1381 = vmatprep.subr.mxu0 0.0
    %1382 = vmatpush1.msra.mxu0 %v452
    %1383 = vmatprep.subr.mxu0 0.0
    %1384 = vmatpush1.msra.mxu0 %v455
    %1385 = vmatprep.subr.mxu0 0.0
    %1386 = vmatpush1.msra.mxu0 %v458
    %1387 = vmatprep.subr.mxu0 0.0
    %1388 = vmatpush1.msra.mxu0 %v461
    %1389 = vmatprep.subr.mxu0 0.0
    %1390 = vmatpush1.msra.mxu0 %v464
    %1391 = vmatprep.subr.mxu0 0.0
    %1392 = vmatpush1.msra.mxu0 %v467
    %1393 = vmatprep.subr.mxu0 0.0
    %1394 = vmatpush1.msra.mxu0 %v470
    %1395 = vmatprep.subr.mxu0 0.0
    %1396 = vmatpush1.msra.mxu0 %v473
    %1397 = vmatprep.subr.mxu0 0.0
    %1398 = vmatpush1.msra.mxu0 0.0
    %1399 = vmatprep.subr.mxu0 0.0
    %1400 = vmatpush1.msra.mxu0 0.0
    %1401 = vmatprep.subr.mxu0 0.0
    %1402 = vmatpush1.msra.mxu0 0.0
    %1403 = vmatprep.subr.mxu0 0.0
    %1404 = vmatpush1.msra.mxu0 0.0
    %1405 = vmatprep.subr.mxu0 0.0
    %1406 = vmatpush1.msra.mxu0 0.0
    %1407 = vmatprep.subr.mxu0 0.0
    %1408 = vmatpush1.msra.mxu0 0.0
    %1409 = vmatprep.subr.mxu0 0.0
    %1410 = vmatpush1.msra.mxu0 0.0
    %1411 = vmatprep.subr.mxu0 0.0
    %1412 = vmatpush1.msra.mxu0 0.0
    %1413 = vmatprep.subr.mxu0 0.0
    %1414 = vmatpush1.msra.mxu0 0.0
    %1415 = vmatprep.subr.mxu0 0.0
    %1416 = vmatpush1.msra.mxu0 0.0
    %1417 = vmatprep.subr.mxu0 0.0
    %1418 = vmatpush1.msra.mxu0 0.0
    %1419 = vmatprep.subr.mxu0 0.0
    %1420 = vmatpush1.msra.mxu0 0.0
    %1421 = vmatprep.subr.mxu0 0.0
    %1422 = vmatpush1.msra.mxu0 0.0
    %1423 = vmatprep.subr.mxu0 0.0
    %1424 = vmatpush1.msra.mxu0 0.0
    %1425 = vmatprep.subr.mxu0 0.0
    %1426 = vmatpush1.msra.mxu0 0.0
    %1427 = vmatprep.subr.mxu0 0.0
    %1428 = vmatpush1.msra.mxu0 0.0
    %1429 = vmatprep.mubr.f32.mxu0 0.0
    %1430 = vmatmul.mubr.f32.gmra.mrb[0].mxu0 %v1290
    %v1431 = vpop.f32.mrb[0].mxu0
    %v1432 = vadd.f32 0.0, %v1431
    %v1433 = vpop.f32.mrb[0].mxu0
    %1434 = vdwg.mxu0
    %v1435 = vadd.f32 %v1291, %v1361
    %v1436 = vmul.f32 %v1435, 0.5
    %v1437 = vtanh.pop %v1436
    %v1438 = vadd.f32 %v1437, 1.0
    %v1439 = vmul.f32 %v1438, 0.5
    %v1440 = vadd.f32 %v1292, %v1363
    %v1441 = vmul.f32 %v1440, 0.5
    %v1442 = vtanh.pop %v1441
    %v1443 = vadd.f32 %v1442, 1.0
    %v1444 = vmul.f32 %v1443, 0.5
    %v1445 = vadd.f32 %v1432, %v633
    %v1446 = vmul.f32 %v1439, %v1445
    %v1447 = vadd.f32 %v1293, %v1446
    %v1448 = vtanh.pop %v1447
    %v1449 = vsub.f32 1.0, %v1444
    %v1450 = vmul.f32 %v1449, %v1448
    %v1451 = vmul.f32 %v1444, %v1290
    %v1452 = vadd.f32 %v1450, %v1451
    %v1453 = vld [vmem:[#allocation2 + $0x90] sm:$0xff]
    %v1454 = vld [vmem:[#allocation2 + $0x98] sm:$0xff]
    %v1455 = vld [vmem:[#allocation2 + $0xa0] sm:$0xff]
    %1456 = vmatprep.subr.mxu0 %v427
    %1457 = vmatpush1.msra.mxu0 %v426
    %1458 = vmatprep.subr.mxu0 %v430
    %1459 = vmatpush1.msra.mxu0 %v429
    %1460 = vmatprep.subr.mxu0 %v433
    %1461 = vmatpush1.msra.mxu0 %v432
    %1462 = vmatprep.subr.mxu0 %v436
    %1463 = vmatpush1.msra.mxu0 %v435
    %1464 = vmatprep.subr.mxu0 %v439
    %1465 = vmatpush1.msra.mxu0 %v438
    %1466 = vmatprep.subr.mxu0 %v442
    %1467 = vmatpush1.msra.mxu0 %v441
    %1468 = vmatprep.subr.mxu0 %v445
    %1469 = vmatpush1.msra.mxu0 %v444
    %1470 = vmatprep.subr.mxu0 %v448
    %1471 = vmatpush1.msra.mxu0 %v447
    %1472 = vmatprep.subr.mxu0 %v451
    %1473 = vmatpush1.msra.mxu0 %v450
    %1474 = vmatprep.subr.mxu0 %v454
    %1475 = vmatpush1.msra.mxu0 %v453
    %1476 = vmatprep.subr.mxu0 %v457
    %1477 = vmatpush1.msra.mxu0 %v456
    %1478 = vmatprep.subr.mxu0 %v460
    %1479 = vmatpush1.msra.mxu0 %v459
    %1480 = vmatprep.subr.mxu0 %v463
    %1481 = vmatpush1.msra.mxu0 %v462
    %1482 = vmatprep.subr.mxu0 %v466
    %1483 = vmatpush1.msra.mxu0 %v465
    %1484 = vmatprep.subr.mxu0 %v469
    %1485 = vmatpush1.msra.mxu0 %v468
    %1486 = vmatprep.subr.mxu0 %v472
    %1487 = vmatpush1.msra.mxu0 %v471
    %1488 = vmatprep.subr.mxu0 0.0
    %1489 = vmatpush1.msra.mxu0 0.0
    %1490 = vmatprep.subr.mxu0 0.0
    %1491 = vmatpush1.msra.mxu0 0.0
    %1492 = vmatprep.subr.mxu0 0.0
    %1493 = vmatpush1.msra.mxu0 0.0
    %1494 = vmatprep.subr.mxu0 0.0
    %1495 = vmatpush1.msra.mxu0 0.0
    %1496 = vmatprep.subr.mxu0 0.0
    %1497 = vmatpush1.msra.mxu0 0.0
    %1498 = vmatprep.subr.mxu0 0.0
    %1499 = vmatpush1.msra.mxu0 0.0
    %1500 = vmatprep.subr.mxu0 0.0
    %1501 = vmatpush1.msra.mxu0 0.0
    %1502 = vmatprep.subr.mxu0 0.0
    %1503 = vmatpush1.msra.mxu0 0.0
    %1504 = vmatprep.subr.mxu0 0.0
    %1505 = vmatpush1.msra.mxu0 0.0
    %1506 = vmatprep.subr.mxu0 0.0
    %1507 = vmatpush1.msra.mxu0 0.0
    %1508 = vmatprep.subr.mxu0 0.0
    %1509 = vmatpush1.msra.mxu0 0.0
    %1510 = vmatprep.subr.mxu0 0.0
    %1511 = vmatpush1.msra.mxu0 0.0
    %1512 = vmatprep.subr.mxu0 0.0
    %1513 = vmatpush1.msra.mxu0 0.0
    %1514 = vmatprep.subr.mxu0 0.0
    %1515 = vmatpush1.msra.mxu0 0.0
    %1516 = vmatprep.subr.mxu0 0.0
    %1517 = vmatpush1.msra.mxu0 0.0
    %1518 = vmatprep.subr.mxu0 0.0
    %1519 = vmatpush1.msra.mxu0 0.0
    %1520 = vmatprep.mubr.f32.mxu0 0.0
    %1521 = vmatmul.mubr.f32.gmra.mrb[0].mxu0 %v1452
    %v1522 = vpop.f32.mrb[0].mxu0
    %v1523 = vadd.f32 0.0, %v1522
    %v1524 = vpop.f32.mrb[0].mxu0
    %v1525 = vadd.f32 0.0, %v1524
    %1526 = vdwg.mxu0
    %1527 = vmatprep.subr.mxu0 0.0
    %1528 = vmatpush1.msra.mxu0 %v428
    %1529 = vmatprep.subr.mxu0 0.0
    %1530 = vmatpush1.msra.mxu0 %v431
    %1531 = vmatprep.subr.mxu0 0.0
    %1532 = vmatpush1.msra.mxu0 %v434
    %1533 = vmatprep.subr.mxu0 0.0
    %1534 = vmatpush1.msra.mxu0 %v437
    %1535 = vmatprep.subr.mxu0 0.0
    %1536 = vmatpush1.msra.mxu0 %v440
    %1537 = vmatprep.subr.mxu0 0.0
    %1538 = vmatpush1.msra.mxu0 %v443
    %1539 = vmatprep.subr.mxu0 0.0
    %1540 = vmatpush1.msra.mxu0 %v446
    %1541 = vmatprep.subr.mxu0 0.0
    %1542 = vmatpush1.msra.mxu0 %v449
    %1543 = vmatprep.subr.mxu0 0.0
    %1544 = vmatpush1.msra.mxu0 %v452
    %1545 = vmatprep.subr.mxu0 0.0
    %1546 = vmatpush1.msra.mxu0 %v455
    %1547 = vmatprep.subr.mxu0 0.0
    %1548 = vmatpush1.msra.mxu0 %v458
    %1549 = vmatprep.subr.mxu0 0.0
    %1550 = vmatpush1.msra.mxu0 %v461
    %1551 = vmatprep.subr.mxu0 0.0
    %1552 = vmatpush1.msra.mxu0 %v464
    %1553 = vmatprep.subr.mxu0 0.0
    %1554 = vmatpush1.msra.mxu0 %v467
    %1555 = vmatprep.subr.mxu0 0.0
    %1556 = vmatpush1.msra.mxu0 %v470
    %1557 = vmatprep.subr.mxu0 0.0
    %1558 = vmatpush1.msra.mxu0 %v473
    %1559 = vmatprep.subr.mxu0 0.0
    %1560 = vmatpush1.msra.mxu0 0.0
    %1561 = vmatprep.subr.mxu0 0.0
    %1562 = vmatpush1.msra.mxu0 0.0
    %1563 = vmatprep.subr.mxu0 0.0
    %1564 = vmatpush1.msra.mxu0 0.0
    %1565 = vmatprep.subr.mxu0 0.0
    %1566 = vmatpush1.msra.mxu0 0.0
    %1567 = vmatprep.subr.mxu0 0.0
    %1568 = vmatpush1.msra.mxu0 0.0
    %1569 = vmatprep.subr.mxu0 0.0
    %1570 = vmatpush1.msra.mxu0 0.0
    %1571 = vmatprep.subr.mxu0 0.0
    %1572 = vmatpush1.msra.mxu0 0.0
    %1573 = vmatprep.subr.mxu0 0.0
    %1574 = vmatpush1.msra.mxu0 0.0
    %1575 = vmatprep.subr.mxu0 0.0
    %1576 = vmatpush1.msra.mxu0 0.0
    %1577 = vmatprep.subr.mxu0 0.0
    %1578 = vmatpush1.msra.mxu0 0.0
    %1579 = vmatprep.subr.mxu0 0.0
    %1580 = vmatpush1.msra.mxu0 0.0
    %1581 = vmatprep.subr.mxu0 0.0
    %1582 = vmatpush1.msra.mxu0 0.0
    %1583 = vmatprep.subr.mxu0 0.0
    %1584 = vmatpush1.msra.mxu0 0.0
    %1585 = vmatprep.subr.mxu0 0.0
    %1586 = vmatpush1.msra.mxu0 0.0
    %1587 = vmatprep.subr.mxu0 0.0
    %1588 = vmatpush1.msra.mxu0 0.0
    %1589 = vmatprep.subr.mxu0 0.0
    %1590 = vmatpush1.msra.mxu0 0.0
    %1591 = vmatprep.mubr.f32.mxu0 0.0
    %1592 = vmatmul.mubr.f32.gmra.mrb[0].mxu0 %v1452
    %v1593 = vpop.f32.mrb[0].mxu0
    %v1594 = vadd.f32 0.0, %v1593
    %v1595 = vpop.f32.mrb[0].mxu0
    %1596 = vdwg.mxu0
    %v1597 = vadd.f32 %v1453, %v1523
    %v1598 = vmul.f32 %v1597, 0.5
    %v1599 = vtanh.pop %v1598
    %v1600 = vadd.f32 %v1599, 1.0
    %v1601 = vmul.f32 %v1600, 0.5
    %v1602 = vadd.f32 %v1454, %v1525
    %v1603 = vmul.f32 %v1602, 0.5
    %v1604 = vtanh.pop %v1603
    %v1605 = vadd.f32 %v1604, 1.0
    %v1606 = vmul.f32 %v1605, 0.5
    %v1607 = vadd.f32 %v1594, %v633
    %v1608 = vmul.f32 %v1601, %v1607
    %v1609 = vadd.f32 %v1455, %v1608
    %v1610 = vtanh.pop %v1609
    %v1611 = vsub.f32 1.0, %v1606
    %v1612 = vmul.f32 %v1611, %v1610
    %v1613 = vmul.f32 %v1606, %v1452
    %v1614 = vadd.f32 %v1612, %v1613
    %v1615 = vld [vmem:[#allocation2 + $0xa8] sm:$0xff]
    %v1616 = vld [vmem:[#allocation2 + $0xb0] sm:$0xff]
    %v1617 = vld [vmem:[#allocation2 + $0xb8] sm:$0xff]
    %1618 = vmatprep.subr.mxu0 %v427
    %1619 = vmatpush1.msra.mxu0 %v426
    %1620 = vmatprep.subr.mxu0 %v430
    %1621 = vmatpush1.msra.mxu0 %v429
    %1622 = vmatprep.subr.mxu0 %v433
    %1623 = vmatpush1.msra.mxu0 %v432
    %1624 = vmatprep.subr.mxu0 %v436
    %1625 = vmatpush1.msra.mxu0 %v435
    %1626 = vmatprep.subr.mxu0 %v439
    %1627 = vmatpush1.msra.mxu0 %v438
    %1628 = vmatprep.subr.mxu0 %v442
    %1629 = vmatpush1.msra.mxu0 %v441
    %1630 = vmatprep.subr.mxu0 %v445
    %1631 = vmatpush1.msra.mxu0 %v444
    %1632 = vmatprep.subr.mxu0 %v448
    %1633 = vmatpush1.msra.mxu0 %v447
    %1634 = vmatprep.subr.mxu0 %v451
    %1635 = vmatpush1.msra.mxu0 %v450
    %1636 = vmatprep.subr.mxu0 %v454
    %1637 = vmatpush1.msra.mxu0 %v453
    %1638 = vmatprep.subr.mxu0 %v457
    %1639 = vmatpush1.msra.mxu0 %v456
    %1640 = vmatprep.subr.mxu0 %v460
    %1641 = vmatpush1.msra.mxu0 %v459
    %1642 = vmatprep.subr.mxu0 %v463
    %1643 = vmatpush1.msra.mxu0 %v462
    %1644 = vmatprep.subr.mxu0 %v466
    %1645 = vmatpush1.msra.mxu0 %v465
    %1646 = vmatprep.subr.mxu0 %v469
    %1647 = vmatpush1.msra.mxu0 %v468
    %1648 = vmatprep.subr.mxu0 %v472
    %1649 = vmatpush1.msra.mxu0 %v471
    %1650 = vmatprep.subr.mxu0 0.0
    %1651 = vmatpush1.msra.mxu0 0.0
    %1652 = vmatprep.subr.mxu0 0.0
    %1653 = vmatpush1.msra.mxu0 0.0
    %1654 = vmatprep.subr.mxu0 0.0
    %1655 = vmatpush1.msra.mxu0 0.0
    %1656 = vmatprep.subr.mxu0 0.0
    %1657 = vmatpush1.msra.mxu0 0.0
    %1658 = vmatprep.subr.mxu0 0.0
    %1659 = vmatpush1.msra.mxu0 0.0
    %1660 = vmatprep.subr.mxu0 0.0
    %1661 = vmatpush1.msra.mxu0 0.0
    %1662 = vmatprep.subr.mxu0 0.0
    %1663 = vmatpush1.msra.mxu0 0.0
    %1664 = vmatprep.subr.mxu0 0.0
    %1665 = vmatpush1.msra.mxu0 0.0
    %1666 = vmatprep.subr.mxu0 0.0
    %1667 = vmatpush1.msra.mxu0 0.0
    %1668 = vmatprep.subr.mxu0 0.0
    %1669 = vmatpush1.msra.mxu0 0.0
    %1670 = vmatprep.subr.mxu0 0.0
    %1671 = vmatpush1.msra.mxu0 0.0
    %1672 = vmatprep.subr.mxu0 0.0
    %1673 = vmatpush1.msra.mxu0 0.0
    %1674 = vmatprep.subr.mxu0 0.0
    %1675 = vmatpush1.msra.mxu0 0.0
    %1676 = vmatprep.subr.mxu0 0.0
    %1677 = vmatpush1.msra.mxu0 0.0
    %1678 = vmatprep.subr.mxu0 0.0
    %1679 = vmatpush1.msra.mxu0 0.0
    %1680 = vmatprep.subr.mxu0 0.0
    %1681 = vmatpush1.msra.mxu0 0.0
    %1682 = vmatprep.mubr.f32.mxu0 0.0
    %1683 = vmatmul.mubr.f32.gmra.mrb[0].mxu0 %v1614
    %v1684 = vpop.f32.mrb[0].mxu0
    %v1685 = vadd.f32 0.0, %v1684
    %v1686 = vpop.f32.mrb[0].mxu0
    %v1687 = vadd.f32 0.0, %v1686
    %1688 = vdwg.mxu0
    %1689 = vmatprep.subr.mxu0 0.0
    %1690 = vmatpush1.msra.mxu0 %v428
    %1691 = vmatprep.subr.mxu0 0.0
    %1692 = vmatpush1.msra.mxu0 %v431
    %1693 = vmatprep.subr.mxu0 0.0
    %1694 = vmatpush1.msra.mxu0 %v434
    %1695 = vmatprep.subr.mxu0 0.0
    %1696 = vmatpush1.msra.mxu0 %v437
    %1697 = vmatprep.subr.mxu0 0.0
    %1698 = vmatpush1.msra.mxu0 %v440
    %1699 = vmatprep.subr.mxu0 0.0
    %1700 = vmatpush1.msra.mxu0 %v443
    %1701 = vmatprep.subr.mxu0 0.0
    %1702 = vmatpush1.msra.mxu0 %v446
    %1703 = vmatprep.subr.mxu0 0.0
    %1704 = vmatpush1.msra.mxu0 %v449
    %1705 = vmatprep.subr.mxu0 0.0
    %1706 = vmatpush1.msra.mxu0 %v452
    %1707 = vmatprep.subr.mxu0 0.0
    %1708 = vmatpush1.msra.mxu0 %v455
    %1709 = vmatprep.subr.mxu0 0.0
    %1710 = vmatpush1.msra.mxu0 %v458
    %1711 = vmatprep.subr.mxu0 0.0
    %1712 = vmatpush1.msra.mxu0 %v461
    %1713 = vmatprep.subr.mxu0 0.0
    %1714 = vmatpush1.msra.mxu0 %v464
    %1715 = vmatprep.subr.mxu0 0.0
    %1716 = vmatpush1.msra.mxu0 %v467
    %1717 = vmatprep.subr.mxu0 0.0
    %1718 = vmatpush1.msra.mxu0 %v470
    %1719 = vmatprep.subr.mxu0 0.0
    %1720 = vmatpush1.msra.mxu0 %v473
    %1721 = vmatprep.subr.mxu0 0.0
    %1722 = vmatpush1.msra.mxu0 0.0
    %1723 = vmatprep.subr.mxu0 0.0
    %1724 = vmatpush1.msra.mxu0 0.0
    %1725 = vmatprep.subr.mxu0 0.0
    %1726 = vmatpush1.msra.mxu0 0.0
    %1727 = vmatprep.subr.mxu0 0.0
    %1728 = vmatpush1.msra.mxu0 0.0
    %1729 = vmatprep.subr.mxu0 0.0
    %1730 = vmatpush1.msra.mxu0 0.0
    %1731 = vmatprep.subr.mxu0 0.0
    %1732 = vmatpush1.msra.mxu0 0.0
    %1733 = vmatprep.subr.mxu0 0.0
    %1734 = vmatpush1.msra.mxu0 0.0
    %1735 = vmatprep.subr.mxu0 0.0
    %1736 = vmatpush1.msra.mxu0 0.0
    %1737 = vmatprep.subr.mxu0 0.0
    %1738 = vmatpush1.msra.mxu0 0.0
    %1739 = vmatprep.subr.mxu0 0.0
    %1740 = vmatpush1.msra.mxu0 0.0
    %1741 = vmatprep.subr.mxu0 0.0
    %1742 = vmatpush1.msra.mxu0 0.0
    %1743 = vmatprep.subr.mxu0 0.0
    %1744 = vmatpush1.msra.mxu0 0.0
    %1745 = vmatprep.subr.mxu0 0.0
    %1746 = vmatpush1.msra.mxu0 0.0
    %1747 = vmatprep.subr.mxu0 0.0
    %1748 = vmatpush1.msra.mxu0 0.0
    %1749 = vmatprep.subr.mxu0 0.0
    %1750 = vmatpush1.msra.mxu0 0.0
    %1751 = vmatprep.subr.mxu0 0.0
    %1752 = vmatpush1.msra.mxu0 0.0
    %1753 = vmatprep.mubr.f32.mxu0 0.0
    %1754 = vmatmul.mubr.f32.gmra.mrb[0].mxu0 %v1614
    %v1755 = vpop.f32.mrb[0].mxu0
    %v1756 = vadd.f32 0.0, %v1755
    %v1757 = vpop.f32.mrb[0].mxu0
    %1758 = vdwg.mxu0
    %v1759 = vadd.f32 %v1615, %v1685
    %v1760 = vmul.f32 %v1759, 0.5
    %v1761 = vtanh.pop %v1760
    %v1762 = vadd.f32 %v1761, 1.0
    %v1763 = vmul.f32 %v1762, 0.5
    %v1764 = vadd.f32 %v1616, %v1687
    %v1765 = vmul.f32 %v1764, 0.5
    %v1766 = vtanh.pop %v1765
    %v1767 = vadd.f32 %v1766, 1.0
    %v1768 = vmul.f32 %v1767, 0.5
    %v1769 = vadd.f32 %v1756, %v633
    %v1770 = vmul.f32 %v1763, %v1769
    %v1771 = vadd.f32 %v1617, %v1770
    %v1772 = vtanh.pop %v1771
    %v1773 = vsub.f32 1.0, %v1768
    %v1774 = vmul.f32 %v1773, %v1772
    %v1775 = vmul.f32 %v1768, %v1614
    %v1776 = vadd.f32 %v1774, %v1775
    %v1777 = vpack.c.bf16 %v1776, %v1776
    %v1778 = vld [vmem:[%s5] sm:$0xf]
    %v1779 = vld [vmem:[%s5 + $0x4] sm:$0xf]
    %v1780 = vld [vmem:[%s5 + $0x8] sm:$0xf]
    %v1781 = vld [vmem:[%s5 + $0xc] sm:$0xf]
    %v1782 = vld [vmem:[%s5 + $0x10] sm:$0xf]
    %v1783 = vld [vmem:[%s5 + $0x14] sm:$0xf]
    %v1784 = vld [vmem:[%s5 + $0x18] sm:$0xf]
    %v1785 = vld [vmem:[%s5 + $0x1c] sm:$0xf]
    %v1786 = vld [vmem:[%s5 + $0x20] sm:$0xf]
    %v1787 = vld [vmem:[%s5 + $0x24] sm:$0xf]
    %v1788 = vld [vmem:[%s5 + $0x28] sm:$0xf]
    %v1789 = vld [vmem:[%s5 + $0x2c] sm:$0xf]
    %v1790 = vld [vmem:[%s5 + $0x30] sm:$0xf]
    %v1791 = vld [vmem:[%s5 + $0x34] sm:$0xf]
    %v1792 = vld [vmem:[%s5 + $0x38] sm:$0xf]
    %v1793 = vld [vmem:[%s5 + $0x3c] sm:$0xf]
    %v1794 = vld [vmem:[%s6] sm:$0x1]
    %v1796 = vlaneseq
    %v1797 = vshrl.u32 %v1796, 7
    %v1798 = vsub.s32 0, %v1797
    %v1799 = vrot.slane %v1794, %v1798
    %v1817 = vunpack.c.l.b16 %v1778
    %v1818 = vunpack.c.l.b16 %v1779
    %v1819 = vunpack.c.l.b16 %v1780
    %v1820 = vunpack.c.l.b16 %v1781
    %v1821 = vunpack.c.l.b16 %v1782
    %v1822 = vunpack.c.l.b16 %v1783
    %v1823 = vunpack.c.l.b16 %v1784
    %v1824 = vunpack.c.l.b16 %v1785
    %v1825 = vunpack.c.l.b16 %v1786
    %v1826 = vunpack.c.l.b16 %v1787
    %v1827 = vunpack.c.l.b16 %v1788
    %v1828 = vunpack.c.l.b16 %v1789
    %v1829 = vunpack.c.l.b16 %v1790
    %v1830 = vunpack.c.l.b16 %v1791
    %v1831 = vunpack.c.l.b16 %v1792
    %v1832 = vunpack.c.l.b16 %v1793
    %v1833 = vpack.c.b16 %v1818, %v1817
    %v1834 = vpack.c.b16 %v1820, %v1819
    %v1835 = vpack.c.b16 %v1822, %v1821
    %v1836 = vpack.c.b16 %v1824, %v1823
    %v1837 = vpack.c.b16 %v1826, %v1825
    %v1838 = vpack.c.b16 %v1828, %v1827
    %v1839 = vpack.c.b16 %v1830, %v1829
    %v1840 = vpack.c.b16 %v1832, %v1831
    %1849 = vmatprep.subr.bf16.mxu0 0
    %1850 = vmatpush1.bf16.msra.mxu0 %v1833
    %1851 = vmatprep.subr.bf16.mxu0 0
    %1852 = vmatpush1.bf16.msra.mxu0 %v1834
    %1853 = vmatprep.subr.bf16.mxu0 0
    %1854 = vmatpush1.bf16.msra.mxu0 %v1835
    %1855 = vmatprep.subr.bf16.mxu0 0
    %1856 = vmatpush1.bf16.msra.mxu0 %v1836
    %1857 = vmatprep.subr.bf16.mxu0 0
    %1858 = vmatpush1.bf16.msra.mxu0 %v1837
    %1859 = vmatprep.subr.bf16.mxu0 0
    %1860 = vmatpush1.bf16.msra.mxu0 %v1838
    %1861 = vmatprep.subr.bf16.mxu0 0
    %1862 = vmatpush1.bf16.msra.mxu0 %v1839
    %1863 = vmatprep.subr.bf16.mxu0 0
    %1864 = vmatpush1.bf16.msra.mxu0 %v1840
    %1865 = vmatprep.subr.bf16.mxu0 0
    %1866 = vmatpush1.bf16.msra.mxu0 0
    %1867 = vmatprep.subr.bf16.mxu0 0
    %1868 = vmatpush1.bf16.msra.mxu0 0
    %1869 = vmatprep.subr.bf16.mxu0 0
    %1870 = vmatpush1.bf16.msra.mxu0 0
    %1871 = vmatprep.subr.bf16.mxu0 0
    %1872 = vmatpush1.bf16.msra.mxu0 0
    %1873 = vmatprep.subr.bf16.mxu0 0
    %1874 = vmatpush1.bf16.msra.mxu0 0
    %1875 = vmatprep.subr.bf16.mxu0 0
    %1876 = vmatpush1.bf16.msra.mxu0 0
    %1877 = vmatprep.subr.bf16.mxu0 0
    %1878 = vmatpush1.bf16.msra.mxu0 0
    %1879 = vmatprep.subr.bf16.mxu0 0
    %1880 = vmatpush1.bf16.msra.mxu0 0
    %1881 = vmatprep.mubr.bf16.mxu0 0
    %1882 = vmatmul.mubr.bf16.gmra.mrb[0].mxu0 %v1777
    %v1883 = vpop.f32.mrb[0].mxu0
    %v1884 = vadd.f32 %v1799, %v1883
    %v1885 = vpop.f32.mrb[0].mxu0
    %v1886 = vpop.f32.mrb[0].mxu0
    %v1887 = vpop.f32.mrb[0].mxu0
    %1888 = vdwg.mxu0
    %1889 = vst [vmem:[%s7] sm:$0xff] %v1884
    // Predicated region
    $region38: #{rnn_conditioner.1} parent=1 // pred_check
      _
    $region39: #{rnn_conditioner.1} parent=1 // pred_check_branch
      %1891 = sbr.rel (0) target = $region41
    $region40: #{rnn_conditioner.1} parent=1 // pred_region
      _
    $region41: #{rnn_conditioner.1} parent=1 // pred_fallthru
      _
    // Predicated region
    $region42: #{rnn_conditioner.1} parent=1 // pred_check
      _
    $region43: #{rnn_conditioner.1} parent=1 // pred_check_branch
      %1893 = sbr.rel (0) target = $region45
    $region44: #{rnn_conditioner.1} parent=1 // pred_region
      _
    $region45: #{rnn_conditioner.1} parent=1 // pred_fallthru
      _
    %1894 = vsyncpa [#allocation4], 1
    %1895 = vsyncpa [#allocation6], 1

</llo_original>
